<compile_context>
chip_gen: v7x
topology: tpu7x:2x2x1
jax: 0.10.0
libtpu: 0.0.40
codegen_flags: <defaults>
</compile_context>

<pallas_src>
import functools

import jax
import jax.numpy as jnp
from jax.experimental import pallas as pl
from jax.experimental.pallas import tpu as pltpu


def _sparse_hop_kernel(thr_ref, w_ref, nodes_ref, cwt_ref, cb_ref, *out_refs,
                       hop, bt, tm, n_row_tiles, mm_dtype):
    """Grid = (B // bt, N // tm).

    thr_ref   : (1,) SMEM        logit threshold log(delta / (1 - delta))
    w_ref     : (bt, N, N)       initial_w block (resident across row tiles)
    nodes_ref : (bt, C, N)       nodes, channel-major (lane-dense) layout
    cwt_ref   : (C, hop*C)       concat_i conv_w[i].T
    cb_ref    : (hop, C)         conv biases
    out_refs  : hop x (bt, C, tm) channel-major hop outputs (row tile of N)
    """
    thr = thr_ref[0]
    cwt = cwt_ref[...]                 # (C, hop*C)
    cb = cb_ref[...]                   # (hop, C)
    C = cb.shape[1]

    if n_row_tiles > 1:
        row0 = pl.multiple_of(pl.program_id(1) * tm, tm)

    for bi in range(bt):               # bt is small & static -> unrolled
        # ---- per-batch-element setup ------------------------------------
        x_nc = nodes_ref[bi].T                                  # (N, C), tiny XLU transpose
        # All hop 1x1 convs pre-applied to the nodes in one MXU matmul.
        y_all = jnp.dot(x_nc, cwt,
                        preferred_element_type=jnp.float32)     # (N, hop*C)

        if n_row_tiles == 1:
            w_rows = w_ref[bi]                                  # (N, N)
        else:
            w_rows = w_ref[bi, pl.ds(row0, tm), :]              # (tm, N)

        # b0 = (sigmoid(W) - delta >= 0)  <=>  W >= logit(delta): no sigmoid.
        bh = (w_rows >= thr).astype(jnp.float32)                # rows of b0
        if n_row_tiles == 1:
            b0_mm = bh.astype(mm_dtype)                         # full b0 (== row tile)
        else:
            b0_mm = (w_ref[bi] >= thr).astype(mm_dtype)         # full (N, N) b0

        # ---- hop loop (static, small) -----------------------------------
        for i in range(hop):
            logits = bh * w_rows                                # (tm, N)
            m = jnp.max(logits, axis=-1, keepdims=True)
            e = jnp.exp(logits - m)
            inv = pl.reciprocal(jnp.sum(e, axis=-1, keepdims=True), approx=True)
            p = e * inv                                         # softmax over last dim

            t = jnp.dot(p, y_all[:, i * C:(i + 1) * C],
                        preferred_element_type=jnp.float32) + cb[i]   # (tm, C)
            out_refs[i][bi] = t.T                               # lane-dense (C, tm) store

            if i != hop - 1:
                # Dominant N^3 term: bf16 MXU path when provably exact.
                bh = jnp.dot(bh.astype(mm_dtype), b0_mm,
                             preferred_element_type=jnp.float32)


def _pick_batch_block(B, N):
    """Batch elements per grid step: amortize grid overhead for small N while
    keeping the resident (bt, N, N) W block modest."""
    budget = 2 << 20                    # <= 2 MiB of W per pipeline buffer
    for cand in range(min(B, 16), 0, -1):
        if B % cand == 0 and cand * N * N * 4 <= budget:
            return cand
    return 1


def _pick_row_tile(N):
    """Row tile of N: full N when small, else 512/256/128 to bound VMEM."""
    if N <= 512:
        return N
    for cand in (512, 256, 128):
        if N % cand == 0:
            return cand
    return N


def sparse_hop_forward(initial_w, nodes, delta, conv_w, conv_b, hop=3):
    """initial_w: (B, N, N), nodes: (B, C, w, h) NCHW, delta: (1,),
    conv_w: (hop, C, C), conv_b: (hop, C).  Returns list of (B, C, w, h)."""
    B, C, wd, ht = nodes.shape
    N = wd * ht
    assert initial_w.shape == (B, N, N)
    assert conv_w.shape == (hop, C, C) and conv_b.shape == (hop, C)

    f32 = jnp.float32
    initial_w = initial_w.astype(f32)
    nodes_cn = nodes.reshape(B, C, N).astype(f32)        # channel-major, no transpose
    # sigmoid(W) >= delta  <=>  W >= log(delta / (1 - delta))
    d = delta.astype(f32)[0]
    thr = (jnp.log(d) - jnp.log1p(-d)).reshape(1)
    # Pre-transposed / concatenated 1x1-conv weights: (C_in, hop * C_out).
    cwt = jnp.concatenate([conv_w[i].T for i in range(hop)], axis=1).astype(f32)
    cb = conv_b.astype(f32)

    bt = _pick_batch_block(B, N)
    tm = _pick_row_tile(N)
    n_row_tiles = N // tm
    # bf16 MXU path for bh @ b0 is exact while the largest bh entry that gets
    # cast (<= N**(hop-2)) is an exactly representable bf16 integer (<= 256).
    use_bf16 = (N ** max(hop - 2, 0)) <= 256
    mm_dtype = jnp.bfloat16 if use_bf16 else jnp.float32

    kernel = functools.partial(
        _sparse_hop_kernel, hop=hop, bt=bt, tm=tm,
        n_row_tiles=n_row_tiles, mm_dtype=mm_dtype)

    out_shapes = tuple(jax.ShapeDtypeStruct((B, C, N), f32) for _ in range(hop))

    # Explicit VMEM budget: double-buffered blocks + in-kernel temporaries.
    est = (2 * bt * N * N * 4                 # W blocks (double-buffered)
           + 2 * bt * C * N * 4               # nodes blocks
           + 2 * hop * bt * C * tm * 4        # output blocks
           + N * N * 4                        # full b0 value
           + 6 * tm * N * 4                   # softmax / bh temporaries
           + N * hop * C * 4 + hop * C * 8)   # Y, conv params
    vmem_limit = min(max(2 * est, 16 * 2 ** 20), 64 * 2 ** 20)

    hops_cn = pl.pallas_call(
        kernel,
        out_shape=out_shapes,
        grid=(B // bt, n_row_tiles),
        in_specs=[
            pl.BlockSpec(memory_space=pltpu.MemorySpace.SMEM),       # thr (scalar)
            pl.BlockSpec((bt, N, N), lambda b, r: (b, 0, 0)),        # initial_w
            pl.BlockSpec((bt, C, N), lambda b, r: (b, 0, 0)),        # nodes (B,C,N)
            pl.BlockSpec((C, hop * C), lambda b, r: (0, 0)),         # conv weights^T
            pl.BlockSpec((hop, C), lambda b, r: (0, 0)),             # conv biases
        ],
        out_specs=tuple(
            pl.BlockSpec((bt, C, tm), lambda b, r: (b, 0, r)) for _ in range(hop)),
        compiler_params=pltpu.CompilerParams(
            dimension_semantics=("parallel", "parallel"),
            vmem_limit_bytes=vmem_limit),
    )(thr, initial_w, nodes_cn, cwt, cb)

    # (B, C, N) -> NCHW (B, C, w, h): pure reshape, no transpose / extra HBM pass.
    return [t.reshape(B, C, wd, ht) for t in hops_cn]


def sparse_hop_reference(initial_w, nodes, delta, conv_w, conv_b, hop=3):
    """Pure-JAX reference mirroring the PyTorch forward exactly."""
    B, C, wd, ht = nodes.shape
    N = wd * ht
    X = jnp.transpose(nodes.reshape(B, C, N), (0, 2, 1))
    b0 = (jax.nn.sigmoid(initial_w) - delta[0] >= 0.0).astype(jnp.float32)
    bh = b0
    hops = []
    for i in range(hop):
        p = jax.nn.softmax(bh * initial_w, axis=-1)
        t = jnp.einsum("bnm,bmc->bnc", p, X)
        t = jnp.einsum("bnc,oc->bno", t, conv_w[i]) + conv_b[i]
        hops.append(jnp.transpose(t, (0, 2, 1)).reshape(B, C, wd, ht))
        if i != hop - 1:
            bh = jnp.einsum("bnm,bmk->bnk", bh, b0)
    return hops


if __name__ == "__main__":
    B, C, wd, ht = 2, 4, 4, 4          # inter_channels = 4
    N = wd * ht
    HOP = 3
    DELTA = 0.5

    key = jax.random.PRNGKey(0)
    k_w, k_nodes, k_cw, k_cb = jax.random.split(key, 4)

    initial_w = jax.random.normal(k_w, (B, N, N), dtype=jnp.float32)
    nodes = jax.random.normal(k_nodes, (B, C, wd, ht), dtype=jnp.float32)

    # Deterministic "parameters" of the module.
    delta = jnp.array([DELTA], dtype=jnp.float32)
    conv_w = 0.1 * jax.random.normal(k_cw, (HOP, C, C), dtype=jnp.float32)
    conv_b = 0.1 * jax.random.normal(k_cb, (HOP, C), dtype=jnp.float32)

    hops = sparse_hop_forward(initial_w, nodes, delta, conv_w, conv_b, hop=HOP)
    hops = [jax.block_until_ready(h) for h in hops]

    refs = sparse_hop_reference(initial_w, nodes, delta, conv_w, conv_b, hop=HOP)
    for h, r in zip(hops, refs):
        assert h.shape == (B, C, wd, ht)
        # approx reciprocal in the softmax denominator -> slightly looser tol.
        assert jnp.allclose(h, r, rtol=2e-3, atol=2e-3), "mismatch vs reference"

    print("KERNEL_OK")
</pallas_src>

<mosaic_0001>
module attributes {stable_mosaic.version = 11 : i64} {
  func.func @_sparse_hop_kernel(%arg0: i32, %arg1: i32, %arg2: memref<1xf32, #tpu.memory_space<smem>>, %arg3: memref<2x16x16xf32, #tpu.memory_space<vmem>>, %arg4: memref<2x4x16xf32, #tpu.memory_space<vmem>>, %arg5: memref<4x12xf32, #tpu.memory_space<vmem>>, %arg6: memref<3x4xf32, #tpu.memory_space<vmem>>, %arg7: memref<2x4x16xf32, #tpu.memory_space<vmem>>, %arg8: memref<2x4x16xf32, #tpu.memory_space<vmem>>, %arg9: memref<2x4x16xf32, #tpu.memory_space<vmem>>) attributes {dimension_semantics = [#tpu.dimension_semantics<parallel>, #tpu.dimension_semantics<parallel>], iteration_bounds = array<i64: 1, 1>, scalar_prefetch = 0 : i64, scratch_operands = 0 : i64, tpu.core_type = #tpu.core_type<tc>, window_params = [{transform_indices = @transform_0, window_bounds = array<i64: 1>}, {transform_indices = @transform_1, window_bounds = array<i64: 2, 16, 16>}, {transform_indices = @transform_2, window_bounds = array<i64: 2, 4, 16>}, {pipeline_mode = #tpu.pipeline_mode<synchronous>, transform_indices = @transform_3, window_bounds = array<i64: 4, 12>}, {pipeline_mode = #tpu.pipeline_mode<synchronous>, transform_indices = @transform_4, window_bounds = array<i64: 3, 4>}, {transform_indices = @transform_5, window_bounds = array<i64: 2, 4, 16>}, {transform_indices = @transform_6, window_bounds = array<i64: 2, 4, 16>}, {transform_indices = @transform_7, window_bounds = array<i64: 2, 4, 16>}]} {
    %c0 = arith.constant 0 : index
    %0 = memref.load %arg2[%c0] : memref<1xf32, #tpu.memory_space<smem>>
    %c0_0 = arith.constant 0 : index
    %c0_1 = arith.constant 0 : index
    %1 = vector.load %arg5[%c0_0, %c0_1] : memref<4x12xf32, #tpu.memory_space<vmem>>, vector<4x12xf32>
    %c0_2 = arith.constant 0 : index
    %c0_3 = arith.constant 0 : index
    %2 = vector.load %arg6[%c0_2, %c0_3] : memref<3x4xf32, #tpu.memory_space<vmem>>, vector<3x4xf32>
    %c0_4 = arith.constant 0 : index
    %c0_5 = arith.constant 0 : index
    %c0_6 = arith.constant 0 : index
    %3 = vector.load %arg4[%c0_4, %c0_5, %c0_6] : memref<2x4x16xf32, #tpu.memory_space<vmem>>, vector<1x4x16xf32>
    %4 = vector.shape_cast %3 : vector<1x4x16xf32> to vector<4x16xf32>
    %5 = tpu.transpose %4, [1, 0] : vector<4x16xf32> -> vector<16x4xf32>
    %cst = arith.constant dense<0.000000e+00> : vector<16x12xf32>
    %6 = tpu.matmul %5, %1, %cst {dimension_numbers = #tpu.dot_dimension_numbers<[1], [0], [0], [1], [0, 0, 1, 1], [], []>} : vector<16x4xf32>, vector<4x12xf32>, vector<16x12xf32> -> vector<16x12xf32>
    %c0_7 = arith.constant 0 : index
    %c0_8 = arith.constant 0 : index
    %c0_9 = arith.constant 0 : index
    %7 = vector.load %arg3[%c0_7, %c0_8, %c0_9] : memref<2x16x16xf32, #tpu.memory_space<vmem>>, vector<1x16x16xf32>
    %8 = vector.shape_cast %7 : vector<1x16x16xf32> to vector<16x16xf32>
    %9 = vector.broadcast %0 : f32 to vector<16x16xf32>
    %10 = arith.cmpf oge, %8, %9 : vector<16x16xf32>
    %11 = arith.extui %10 : vector<16x16xi1> to vector<16x16xi32>
    %12 = arith.sitofp %11 : vector<16x16xi32> to vector<16x16xf32>
    %13 = arith.truncf %12 : vector<16x16xf32> to vector<16x16xbf16>
    %14 = arith.mulf %12, %8 : vector<16x16xf32>
    %cst_10 = arith.constant dense<0xFF800000> : vector<16xf32>
    %15 = vector.multi_reduction <maximumf>, %14, %cst_10 [1] : vector<16x16xf32> to vector<16xf32>
    %16 = vector.shape_cast %15 : vector<16xf32> to vector<16x1xf32>
    %17 = vector.broadcast %16 : vector<16x1xf32> to vector<16x16xf32>
    %18 = arith.subf %14, %17 : vector<16x16xf32>
    %19 = math.exp %18 : vector<16x16xf32>
    %cst_11 = arith.constant dense<0.000000e+00> : vector<16xf32>
    %20 = vector.multi_reduction <add>, %19, %cst_11 [1] : vector<16x16xf32> to vector<16xf32>
    %21 = vector.shape_cast %20 : vector<16xf32> to vector<16x1xf32>
    %22 = tpu.reciprocal %21 {approx = true} : vector<16x1xf32> -> vector<16x1xf32>
    %23 = vector.broadcast %22 : vector<16x1xf32> to vector<16x16xf32>
    %24 = arith.mulf %19, %23 : vector<16x16xf32>
    %25 = vector.extract_strided_slice %6 {offsets = [0, 0], sizes = [16, 4], strides = [1, 1]} : vector<16x12xf32> to vector<16x4xf32>
    %cst_12 = arith.constant dense<0.000000e+00> : vector<16x4xf32>
    %26 = tpu.matmul %24, %25, %cst_12 {dimension_numbers = #tpu.dot_dimension_numbers<[1], [0], [0], [1], [0, 0, 1, 1], [], []>} : vector<16x16xf32>, vector<16x4xf32>, vector<16x4xf32> -> vector<16x4xf32>
    %27 = vector.extract_strided_slice %2 {offsets = [0, 0], sizes = [1, 4], strides = [1, 1]} : vector<3x4xf32> to vector<1x4xf32>
    %28 = vector.shape_cast %27 : vector<1x4xf32> to vector<4xf32>
    %29 = vector.shape_cast %28 : vector<4xf32> to vector<1x4xf32>
    %30 = vector.broadcast %29 : vector<1x4xf32> to vector<16x4xf32>
    %31 = arith.addf %26, %30 : vector<16x4xf32>
    %32 = tpu.transpose %31, [1, 0] : vector<16x4xf32> -> vector<4x16xf32>
    %c0_13 = arith.constant 0 : index
    %c0_14 = arith.constant 0 : index
    %c0_15 = arith.constant 0 : index
    %33 = vector.load %arg7[%c0_13, %c0_14, %c0_15] : memref<2x4x16xf32, #tpu.memory_space<vmem>>, vector<1x4x16xf32>
    %34 = vector.shape_cast %33 : vector<1x4x16xf32> to vector<4x16xf32>
    %35 = vector.shape_cast %32 : vector<4x16xf32> to vector<1x4x16xf32>
    tpu.vector_store %arg7[%c0_13, %c0_14, %c0_15], %35 {strides = array<i32>} : memref<2x4x16xf32, #tpu.memory_space<vmem>>, vector<1x4x16xf32>,
    %36 = arith.truncf %12 : vector<16x16xf32> to vector<16x16xbf16>
    %cst_16 = arith.constant dense<0.000000e+00> : vector<16x16xf32>
    %37 = tpu.matmul %36, %13, %cst_16 {dimension_numbers = #tpu.dot_dimension_numbers<[1], [0], [0], [1], [0, 0, 1, 1], [], []>} : vector<16x16xbf16>, vector<16x16xbf16>, vector<16x16xf32> -> vector<16x16xf32>
    %38 = arith.mulf %37, %8 : vector<16x16xf32>
    %cst_17 = arith.constant dense<0xFF800000> : vector<16xf32>
    %39 = vector.multi_reduction <maximumf>, %38, %cst_17 [1] : vector<16x16xf32> to vector<16xf32>
    %40 = vector.shape_cast %39 : vector<16xf32> to vector<16x1xf32>
    %41 = vector.broadcast %40 : vector<16x1xf32> to vector<16x16xf32>
    %42 = arith.subf %38, %41 : vector<16x16xf32>
    %43 = math.exp %42 : vector<16x16xf32>
    %cst_18 = arith.constant dense<0.000000e+00> : vector<16xf32>
    %44 = vector.multi_reduction <add>, %43, %cst_18 [1] : vector<16x16xf32> to vector<16xf32>
    %45 = vector.shape_cast %44 : vector<16xf32> to vector<16x1xf32>
    %46 = tpu.reciprocal %45 {approx = true} : vector<16x1xf32> -> vector<16x1xf32>
    %47 = vector.broadcast %46 : vector<16x1xf32> to vector<16x16xf32>
    %48 = arith.mulf %43, %47 : vector<16x16xf32>
    %49 = vector.extract_strided_slice %6 {offsets = [0, 4], sizes = [16, 4], strides = [1, 1]} : vector<16x12xf32> to vector<16x4xf32>
    %cst_19 = arith.constant dense<0.000000e+00> : vector<16x4xf32>
    %50 = tpu.matmul %48, %49, %cst_19 {dimension_numbers = #tpu.dot_dimension_numbers<[1], [0], [0], [1], [0, 0, 1, 1], [], []>} : vector<16x16xf32>, vector<16x4xf32>, vector<16x4xf32> -> vector<16x4xf32>
    %51 = vector.extract_strided_slice %2 {offsets = [1, 0], sizes = [1, 4], strides = [1, 1]} : vector<3x4xf32> to vector<1x4xf32>
    %52 = vector.shape_cast %51 : vector<1x4xf32> to vector<4xf32>
    %53 = vector.shape_cast %52 : vector<4xf32> to vector<1x4xf32>
    %54 = vector.broadcast %53 : vector<1x4xf32> to vector<16x4xf32>
    %55 = arith.addf %50, %54 : vector<16x4xf32>
    %56 = tpu.transpose %55, [1, 0] : vector<16x4xf32> -> vector<4x16xf32>
    %c0_20 = arith.constant 0 : index
    %c0_21 = arith.constant 0 : index
    %c0_22 = arith.constant 0 : index
    %57 = vector.load %arg8[%c0_20, %c0_21, %c0_22] : memref<2x4x16xf32, #tpu.memory_space<vmem>>, vector<1x4x16xf32>
    %58 = vector.shape_cast %57 : vector<1x4x16xf32> to vector<4x16xf32>
    %59 = vector.shape_cast %56 : vector<4x16xf32> to vector<1x4x16xf32>
    tpu.vector_store %arg8[%c0_20, %c0_21, %c0_22], %59 {strides = array<i32>} : memref<2x4x16xf32, #tpu.memory_space<vmem>>, vector<1x4x16xf32>,
    %60 = arith.truncf %37 : vector<16x16xf32> to vector<16x16xbf16>
    %cst_23 = arith.constant dense<0.000000e+00> : vector<16x16xf32>
    %61 = tpu.matmul %60, %13, %cst_23 {dimension_numbers = #tpu.dot_dimension_numbers<[1], [0], [0], [1], [0, 0, 1, 1], [], []>} : vector<16x16xbf16>, vector<16x16xbf16>, vector<16x16xf32> -> vector<16x16xf32>
    %62 = arith.mulf %61, %8 : vector<16x16xf32>
    %cst_24 = arith.constant dense<0xFF800000> : vector<16xf32>
    %63 = vector.multi_reduction <maximumf>, %62, %cst_24 [1] : vector<16x16xf32> to vector<16xf32>
    %64 = vector.shape_cast %63 : vector<16xf32> to vector<16x1xf32>
    %65 = vector.broadcast %64 : vector<16x1xf32> to vector<16x16xf32>
    %66 = arith.subf %62, %65 : vector<16x16xf32>
    %67 = math.exp %66 : vector<16x16xf32>
    %cst_25 = arith.constant dense<0.000000e+00> : vector<16xf32>
    %68 = vector.multi_reduction <add>, %67, %cst_25 [1] : vector<16x16xf32> to vector<16xf32>
    %69 = vector.shape_cast %68 : vector<16xf32> to vector<16x1xf32>
    %70 = tpu.reciprocal %69 {approx = true} : vector<16x1xf32> -> vector<16x1xf32>
    %71 = vector.broadcast %70 : vector<16x1xf32> to vector<16x16xf32>
    %72 = arith.mulf %67, %71 : vector<16x16xf32>
    %73 = vector.extract_strided_slice %6 {offsets = [0, 8], sizes = [16, 4], strides = [1, 1]} : vector<16x12xf32> to vector<16x4xf32>
    %cst_26 = arith.constant dense<0.000000e+00> : vector<16x4xf32>
    %74 = tpu.matmul %72, %73, %cst_26 {dimension_numbers = #tpu.dot_dimension_numbers<[1], [0], [0], [1], [0, 0, 1, 1], [], []>} : vector<16x16xf32>, vector<16x4xf32>, vector<16x4xf32> -> vector<16x4xf32>
    %75 = vector.extract_strided_slice %2 {offsets = [2, 0], sizes = [1, 4], strides = [1, 1]} : vector<3x4xf32> to vector<1x4xf32>
    %76 = vector.shape_cast %75 : vector<1x4xf32> to vector<4xf32>
    %77 = vector.shape_cast %76 : vector<4xf32> to vector<1x4xf32>
    %78 = vector.broadcast %77 : vector<1x4xf32> to vector<16x4xf32>
    %79 = arith.addf %74, %78 : vector<16x4xf32>
    %80 = tpu.transpose %79, [1, 0] : vector<16x4xf32> -> vector<4x16xf32>
    %c0_27 = arith.constant 0 : index
    %c0_28 = arith.constant 0 : index
    %c0_29 = arith.constant 0 : index
    %81 = vector.load %arg9[%c0_27, %c0_28, %c0_29] : memref<2x4x16xf32, #tpu.memory_space<vmem>>, vector<1x4x16xf32>
    %82 = vector.shape_cast %81 : vector<1x4x16xf32> to vector<4x16xf32>
    %83 = vector.shape_cast %80 : vector<4x16xf32> to vector<1x4x16xf32>
    tpu.vector_store %arg9[%c0_27, %c0_28, %c0_29], %83 {strides = array<i32>} : memref<2x4x16xf32, #tpu.memory_space<vmem>>, vector<1x4x16xf32>,
    %c1 = arith.constant 1 : index
    %c0_30 = arith.constant 0 : index
    %c0_31 = arith.constant 0 : index
    %84 = vector.load %arg4[%c1, %c0_30, %c0_31] : memref<2x4x16xf32, #tpu.memory_space<vmem>>, vector<1x4x16xf32>
    %85 = vector.shape_cast %84 : vector<1x4x16xf32> to vector<4x16xf32>
    %86 = tpu.transpose %85, [1, 0] : vector<4x16xf32> -> vector<16x4xf32>
    %cst_32 = arith.constant dense<0.000000e+00> : vector<16x12xf32>
    %87 = tpu.matmul %86, %1, %cst_32 {dimension_numbers = #tpu.dot_dimension_numbers<[1], [0], [0], [1], [0, 0, 1, 1], [], []>} : vector<16x4xf32>, vector<4x12xf32>, vector<16x12xf32> -> vector<16x12xf32>
    %c1_33 = arith.constant 1 : index
    %c0_34 = arith.constant 0 : index
    %c0_35 = arith.constant 0 : index
    %88 = vector.load %arg3[%c1_33, %c0_34, %c0_35] : memref<2x16x16xf32, #tpu.memory_space<vmem>>, vector<1x16x16xf32>
    %89 = vector.shape_cast %88 : vector<1x16x16xf32> to vector<16x16xf32>
    %90 = vector.broadcast %0 : f32 to vector<16x16xf32>
    %91 = arith.cmpf oge, %89, %90 : vector<16x16xf32>
    %92 = arith.extui %91 : vector<16x16xi1> to vector<16x16xi32>
    %93 = arith.sitofp %92 : vector<16x16xi32> to vector<16x16xf32>
    %94 = arith.truncf %93 : vector<16x16xf32> to vector<16x16xbf16>
    %95 = arith.mulf %93, %89 : vector<16x16xf32>
    %cst_36 = arith.constant dense<0xFF800000> : vector<16xf32>
    %96 = vector.multi_reduction <maximumf>, %95, %cst_36 [1] : vector<16x16xf32> to vector<16xf32>
    %97 = vector.shape_cast %96 : vector<16xf32> to vector<16x1xf32>
    %98 = vector.broadcast %97 : vector<16x1xf32> to vector<16x16xf32>
    %99 = arith.subf %95, %98 : vector<16x16xf32>
    %100 = math.exp %99 : vector<16x16xf32>
    %cst_37 = arith.constant dense<0.000000e+00> : vector<16xf32>
    %101 = vector.multi_reduction <add>, %100, %cst_37 [1] : vector<16x16xf32> to vector<16xf32>
    %102 = vector.shape_cast %101 : vector<16xf32> to vector<16x1xf32>
    %103 = tpu.reciprocal %102 {approx = true} : vector<16x1xf32> -> vector<16x1xf32>
    %104 = vector.broadcast %103 : vector<16x1xf32> to vector<16x16xf32>
    %105 = arith.mulf %100, %104 : vector<16x16xf32>
    %106 = vector.extract_strided_slice %87 {offsets = [0, 0], sizes = [16, 4], strides = [1, 1]} : vector<16x12xf32> to vector<16x4xf32>
    %cst_38 = arith.constant dense<0.000000e+00> : vector<16x4xf32>
    %107 = tpu.matmul %105, %106, %cst_38 {dimension_numbers = #tpu.dot_dimension_numbers<[1], [0], [0], [1], [0, 0, 1, 1], [], []>} : vector<16x16xf32>, vector<16x4xf32>, vector<16x4xf32> -> vector<16x4xf32>
    %108 = vector.extract_strided_slice %2 {offsets = [0, 0], sizes = [1, 4], strides = [1, 1]} : vector<3x4xf32> to vector<1x4xf32>
    %109 = vector.shape_cast %108 : vector<1x4xf32> to vector<4xf32>
    %110 = vector.shape_cast %109 : vector<4xf32> to vector<1x4xf32>
    %111 = vector.broadcast %110 : vector<1x4xf32> to vector<16x4xf32>
    %112 = arith.addf %107, %111 : vector<16x4xf32>
    %113 = tpu.transpose %112, [1, 0] : vector<16x4xf32> -> vector<4x16xf32>
    %c1_39 = arith.constant 1 : index
    %c0_40 = arith.constant 0 : index
    %c0_41 = arith.constant 0 : index
    %114 = vector.load %arg7[%c1_39, %c0_40, %c0_41] : memref<2x4x16xf32, #tpu.memory_space<vmem>>, vector<1x4x16xf32>
    %115 = vector.shape_cast %114 : vector<1x4x16xf32> to vector<4x16xf32>
    %116 = vector.shape_cast %113 : vector<4x16xf32> to vector<1x4x16xf32>
    tpu.vector_store %arg7[%c1_39, %c0_40, %c0_41], %116 {strides = array<i32>} : memref<2x4x16xf32, #tpu.memory_space<vmem>>, vector<1x4x16xf32>,
    %117 = arith.truncf %93 : vector<16x16xf32> to vector<16x16xbf16>
    %cst_42 = arith.constant dense<0.000000e+00> : vector<16x16xf32>
    %118 = tpu.matmul %117, %94, %cst_42 {dimension_numbers = #tpu.dot_dimension_numbers<[1], [0], [0], [1], [0, 0, 1, 1], [], []>} : vector<16x16xbf16>, vector<16x16xbf16>, vector<16x16xf32> -> vector<16x16xf32>
    %119 = arith.mulf %118, %89 : vector<16x16xf32>
    %cst_43 = arith.constant dense<0xFF800000> : vector<16xf32>
    %120 = vector.multi_reduction <maximumf>, %119, %cst_43 [1] : vector<16x16xf32> to vector<16xf32>
    %121 = vector.shape_cast %120 : vector<16xf32> to vector<16x1xf32>
    %122 = vector.broadcast %121 : vector<16x1xf32> to vector<16x16xf32>
    %123 = arith.subf %119, %122 : vector<16x16xf32>
    %124 = math.exp %123 : vector<16x16xf32>
    %cst_44 = arith.constant dense<0.000000e+00> : vector<16xf32>
    %125 = vector.multi_reduction <add>, %124, %cst_44 [1] : vector<16x16xf32> to vector<16xf32>
    %126 = vector.shape_cast %125 : vector<16xf32> to vector<16x1xf32>
    %127 = tpu.reciprocal %126 {approx = true} : vector<16x1xf32> -> vector<16x1xf32>
    %128 = vector.broadcast %127 : vector<16x1xf32> to vector<16x16xf32>
    %129 = arith.mulf %124, %128 : vector<16x16xf32>
    %130 = vector.extract_strided_slice %87 {offsets = [0, 4], sizes = [16, 4], strides = [1, 1]} : vector<16x12xf32> to vector<16x4xf32>
    %cst_45 = arith.constant dense<0.000000e+00> : vector<16x4xf32>
    %131 = tpu.matmul %129, %130, %cst_45 {dimension_numbers = #tpu.dot_dimension_numbers<[1], [0], [0], [1], [0, 0, 1, 1], [], []>} : vector<16x16xf32>, vector<16x4xf32>, vector<16x4xf32> -> vector<16x4xf32>
    %132 = vector.extract_strided_slice %2 {offsets = [1, 0], sizes = [1, 4], strides = [1, 1]} : vector<3x4xf32> to vector<1x4xf32>
    %133 = vector.shape_cast %132 : vector<1x4xf32> to vector<4xf32>
    %134 = vector.shape_cast %133 : vector<4xf32> to vector<1x4xf32>
    %135 = vector.broadcast %134 : vector<1x4xf32> to vector<16x4xf32>
    %136 = arith.addf %131, %135 : vector<16x4xf32>
    %137 = tpu.transpose %136, [1, 0] : vector<16x4xf32> -> vector<4x16xf32>
    %c1_46 = arith.constant 1 : index
    %c0_47 = arith.constant 0 : index
    %c0_48 = arith.constant 0 : index
    %138 = vector.load %arg8[%c1_46, %c0_47, %c0_48] : memref<2x4x16xf32, #tpu.memory_space<vmem>>, vector<1x4x16xf32>
    %139 = vector.shape_cast %138 : vector<1x4x16xf32> to vector<4x16xf32>
    %140 = vector.shape_cast %137 : vector<4x16xf32> to vector<1x4x16xf32>
    tpu.vector_store %arg8[%c1_46, %c0_47, %c0_48], %140 {strides = array<i32>} : memref<2x4x16xf32, #tpu.memory_space<vmem>>, vector<1x4x16xf32>,
    %141 = arith.truncf %118 : vector<16x16xf32> to vector<16x16xbf16>
    %cst_49 = arith.constant dense<0.000000e+00> : vector<16x16xf32>
    %142 = tpu.matmul %141, %94, %cst_49 {dimension_numbers = #tpu.dot_dimension_numbers<[1], [0], [0], [1], [0, 0, 1, 1], [], []>} : vector<16x16xbf16>, vector<16x16xbf16>, vector<16x16xf32> -> vector<16x16xf32>
    %143 = arith.mulf %142, %89 : vector<16x16xf32>
    %cst_50 = arith.constant dense<0xFF800000> : vector<16xf32>
    %144 = vector.multi_reduction <maximumf>, %143, %cst_50 [1] : vector<16x16xf32> to vector<16xf32>
    %145 = vector.shape_cast %144 : vector<16xf32> to vector<16x1xf32>
    %146 = vector.broadcast %145 : vector<16x1xf32> to vector<16x16xf32>
    %147 = arith.subf %143, %146 : vector<16x16xf32>
    %148 = math.exp %147 : vector<16x16xf32>
    %cst_51 = arith.constant dense<0.000000e+00> : vector<16xf32>
    %149 = vector.multi_reduction <add>, %148, %cst_51 [1] : vector<16x16xf32> to vector<16xf32>
    %150 = vector.shape_cast %149 : vector<16xf32> to vector<16x1xf32>
    %151 = tpu.reciprocal %150 {approx = true} : vector<16x1xf32> -> vector<16x1xf32>
    %152 = vector.broadcast %151 : vector<16x1xf32> to vector<16x16xf32>
    %153 = arith.mulf %148, %152 : vector<16x16xf32>
    %154 = vector.extract_strided_slice %87 {offsets = [0, 8], sizes = [16, 4], strides = [1, 1]} : vector<16x12xf32> to vector<16x4xf32>
    %cst_52 = arith.constant dense<0.000000e+00> : vector<16x4xf32>
    %155 = tpu.matmul %153, %154, %cst_52 {dimension_numbers = #tpu.dot_dimension_numbers<[1], [0], [0], [1], [0, 0, 1, 1], [], []>} : vector<16x16xf32>, vector<16x4xf32>, vector<16x4xf32> -> vector<16x4xf32>
    %156 = vector.extract_strided_slice %2 {offsets = [2, 0], sizes = [1, 4], strides = [1, 1]} : vector<3x4xf32> to vector<1x4xf32>
    %157 = vector.shape_cast %156 : vector<1x4xf32> to vector<4xf32>
    %158 = vector.shape_cast %157 : vector<4xf32> to vector<1x4xf32>
    %159 = vector.broadcast %158 : vector<1x4xf32> to vector<16x4xf32>
    %160 = arith.addf %155, %159 : vector<16x4xf32>
    %161 = tpu.transpose %160, [1, 0] : vector<16x4xf32> -> vector<4x16xf32>
    %c1_53 = arith.constant 1 : index
    %c0_54 = arith.constant 0 : index
    %c0_55 = arith.constant 0 : index
    %162 = vector.load %arg9[%c1_53, %c0_54, %c0_55] : memref<2x4x16xf32, #tpu.memory_space<vmem>>, vector<1x4x16xf32>
    %163 = vector.shape_cast %162 : vector<1x4x16xf32> to vector<4x16xf32>
    %164 = vector.shape_cast %161 : vector<4x16xf32> to vector<1x4x16xf32>
    tpu.vector_store %arg9[%c1_53, %c0_54, %c0_55], %164 {strides = array<i32>} : memref<2x4x16xf32, #tpu.memory_space<vmem>>, vector<1x4x16xf32>,
    return
  }
  func.func @transform_0(%arg0: i32, %arg1: i32) -> i32 {
    %c0_i32 = arith.constant 0 : i32
    %c0_i32_0 = arith.constant 0 : i32
    return %c0_i32 : i32
  }
  func.func @transform_1(%arg0: i32, %arg1: i32) -> (i32, i32, i32) {
    %c0_i32 = arith.constant 0 : i32
    %c0_i32_0 = arith.constant 0 : i32
    %c0_i32_1 = arith.constant 0 : i32
    return %arg0, %c0_i32, %c0_i32_0 : i32, i32, i32
  }
  func.func @transform_2(%arg0: i32, %arg1: i32) -> (i32, i32, i32) {
    %c0_i32 = arith.constant 0 : i32
    %c0_i32_0 = arith.constant 0 : i32
    %c0_i32_1 = arith.constant 0 : i32
    return %arg0, %c0_i32, %c0_i32_0 : i32, i32, i32
  }
  func.func @transform_3(%arg0: i32, %arg1: i32) -> (i32, i32) {
    %c0_i32 = arith.constant 0 : i32
    %c0_i32_0 = arith.constant 0 : i32
    %c0_i32_1 = arith.constant 0 : i32
    return %c0_i32, %c0_i32_0 : i32, i32
  }
  func.func @transform_4(%arg0: i32, %arg1: i32) -> (i32, i32) {
    %c0_i32 = arith.constant 0 : i32
    %c0_i32_0 = arith.constant 0 : i32
    %c0_i32_1 = arith.constant 0 : i32
    return %c0_i32, %c0_i32_0 : i32, i32
  }
  func.func @transform_5(%arg0: i32, %arg1: i32) -> (i32, i32, i32) {
    %c0_i32 = arith.constant 0 : i32
    %c0_i32_0 = arith.constant 0 : i32
    return %arg0, %c0_i32, %arg1 : i32, i32, i32
  }
  func.func @transform_6(%arg0: i32, %arg1: i32) -> (i32, i32, i32) {
    %c0_i32 = arith.constant 0 : i32
    %c0_i32_0 = arith.constant 0 : i32
    return %arg0, %c0_i32, %arg1 : i32, i32, i32
  }
  func.func @transform_7(%arg0: i32, %arg1: i32) -> (i32, i32, i32) {
    %c0_i32 = arith.constant 0 : i32
    %c0_i32_0 = arith.constant 0 : i32
    return %arg0, %c0_i32, %arg1 : i32, i32, i32
  }
}

</mosaic_0001>

<llo_original>
// kernel: tpu_custom_call.1
$region0: #{tpu_custom_call.1}
  #allocation0 [shape = 'u32[]', space=smem, size = 0x4, offset = 0x4, fixed_abs, tag = 'smem constant byte address 0x4 - core index']
  #allocation1 [shape = 'u32[144,128]{1,0:T(1,128)}', space=vmem, size = 0x12000, scoped, tag = 'internal scratch']
  #allocation2 [shape = 'f32[1]{0:T(128)S(6)}', space=smem, size = 0x200, scoped, tag = 'scoped memory for tpu_custom_call.1']
  %s0 = inlined_call_operand.<no memory space> [shape: f32[1], index: 0, kind: input, shape index: {}]
  %s1 = inlined_call_operand.hbm [shape: f32[2,16,16], index: 1, kind: input, shape index: {}]
  %s2 = inlined_call_operand.hbm [shape: f32[2,4,16], index: 2, kind: input, shape index: {}]
  %s3 = inlined_call_operand.vmem [shape: f32[4,12], index: 3, kind: input, shape index: {}]
  %s4 = inlined_call_operand.vmem [shape: f32[3,4], index: 4, kind: input, shape index: {}]
  %s5 = inlined_call_operand.hbm [shape: f32[2,4,16], index: 5, kind: output, shape index: {0}]
  %s6 = inlined_call_operand.hbm [shape: f32[2,4,16], index: 6, kind: output, shape index: {1}]
  %s7 = inlined_call_operand.hbm [shape: f32[2,4,16], index: 7, kind: output, shape index: {2}]
  %8 = xla_tuple %s5, %s6, %s7
  %s9 = sld [smem:[#allocation0]]
  $region54: #{tpu_custom_call.1} parent=0
    _
  %s11 = ssub.s32 1, %s9
  %s12 = scalar_select 0, %s11, %s9
  %13 = sst [smem:[#allocation2]] %s0
  $region1: #{tpu_custom_call.1} parent=0
    #allocation3 [shape = 'u8[16384]{0}', space=vmem, size = 0x4000, scoped, tag = 'input window, operand 1, single buffered']
    #allocation4 [shape = 's32[1]{0}', space=sflag, size = 0x4, scoped, tag = 'scoped memory for tpu_custom_call.1']
    #allocation5 [shape = 's32[1]{0}', space=sflag, size = 0x4, scoped, tag = 'scoped memory for tpu_custom_call.1']
    #allocation6 [shape = 'u8[4096]{0}', space=vmem, size = 0x1000, scoped, tag = 'input window, operand 2, single buffered']
    #allocation7 [shape = 's32[1]{0}', space=sflag, size = 0x4, scoped, tag = 'scoped memory for tpu_custom_call.1']
    #allocation8 [shape = 'u8[4096]{0}', space=vmem, size = 0x1000, scoped, tag = 'output window, operand 0, single buffered']
    #allocation9 [shape = 'u8[4096]{0}', space=vmem, size = 0x1000, scoped, tag = 'output window, operand 1, single buffered']
    #allocation10 [shape = 's32[1]{0}', space=sflag, size = 0x4, scoped, tag = 'scoped memory for tpu_custom_call.1']
    #allocation11 [shape = 'u8[4096]{0}', space=vmem, size = 0x1000, scoped, tag = 'output window, operand 2, single buffered']
    %14 = vsyncpa [#allocation4], 0
    %15 = vsyncpa [#allocation7], 0
    %16 = vsyncpa [#allocation5], 0
    %17 = vsyncpa [#allocation10], 0
    // Predicated region
    $region2: #{tpu_custom_call.1} parent=1 // pred_check
      _
    $region3: #{tpu_custom_call.1} parent=1 // pred_check_branch
      %19 = sbr.rel (0) target = $region5
    $region4: #{tpu_custom_call.1} parent=1 // pred_region
      _
    $region5: #{tpu_custom_call.1} parent=1 // pred_fallthru
      _
    // Predicated region
    $region6: #{tpu_custom_call.1} parent=1 // pred_check
      _
    $region7: #{tpu_custom_call.1} parent=1 // pred_check_branch
      %21 = sbr.rel (0) target = $region9
    $region8: #{tpu_custom_call.1} parent=1 // pred_region
      %s23 = ssub.s32 512, 512
      %24 = vsyncadd [#allocation4], %s23
      %s25 = sshll.u32 [#allocation3], 4
      %s26 = int_to_ptr.vmem [resolvable:$true] %s25
      %31 = dma.hbm_to_vmem [thread:$0]  %s1, 512, %s26, [#allocation4], 128, 128, 8
    $region9: #{tpu_custom_call.1} parent=1 // pred_fallthru
      _
    // Predicated region
    $region10: #{tpu_custom_call.1} parent=1 // pred_check
      _
    $region11: #{tpu_custom_call.1} parent=1 // pred_check_branch
      %33 = sbr.rel (0) target = $region13
    $region12: #{tpu_custom_call.1} parent=1 // pred_region
      %s35 = ssub.s32 128, 128
      %36 = vsyncadd [#allocation7], %s35
      %s37 = sshll.u32 [#allocation6], 4
      %s38 = int_to_ptr.vmem [resolvable:$true] %s37
      %43 = dma.hbm_to_vmem [thread:$0]  %s2, 128, %s38, [#allocation7], 64, 64, 4
    $region13: #{tpu_custom_call.1} parent=1 // pred_fallthru
      _
    // Predicated region
    $region14: #{tpu_custom_call.1} parent=1 // pred_check
      _
    $region15: #{tpu_custom_call.1} parent=1 // pred_check_branch
      %45 = sbr.rel (0) target = $region17
    $region16: #{tpu_custom_call.1} parent=1 // pred_region
      _
    $region17: #{tpu_custom_call.1} parent=1 // pred_fallthru
      _
    // Predicated region
    $region18: #{tpu_custom_call.1} parent=1 // pred_check
      _
    $region19: #{tpu_custom_call.1} parent=1 // pred_check_branch
      %47 = sbr.rel (0) target = $region21
    $region20: #{tpu_custom_call.1} parent=1 // pred_region
      _
    $region21: #{tpu_custom_call.1} parent=1 // pred_fallthru
      _
    // Predicated region
    $region22: #{tpu_custom_call.1} parent=1 // pred_check
      _
    $region23: #{tpu_custom_call.1} parent=1 // pred_check_branch
      %49 = sbr.rel (0) target = $region25
    $region24: #{tpu_custom_call.1} parent=1 // pred_region
      %50 = dma.done [#allocation4], 512
    $region25: #{tpu_custom_call.1} parent=1 // pred_fallthru
      _
    // Predicated region
    $region26: #{tpu_custom_call.1} parent=1 // pred_check
      _
    $region27: #{tpu_custom_call.1} parent=1 // pred_check_branch
      %52 = sbr.rel (0) target = $region29
    $region28: #{tpu_custom_call.1} parent=1 // pred_region
      %53 = dma.done [#allocation7], 128
    $region29: #{tpu_custom_call.1} parent=1 // pred_fallthru
      _
    %s55 = sld [smem:[#allocation2]]
    %v56 = vld [vmem:[%s3] sm:$0xf]
    %v57 = vld [vmem:[%s4] sm:$0x7]
    %v58 = vld [vmem:[#allocation6] sm:$0xf]
    %59 = vxpose.xlu0.b32.start [1/16] %v58, 128
    %60 = vxpose.xlu0.b32.cont [2/16] 0.0, 128
    %61 = vxpose.xlu0.b32.cont [3/16] 0.0, 128
    %62 = vxpose.xlu0.b32.cont [4/16] 0.0, 128
    %63 = vxpose.xlu0.b32.cont [5/16] 0.0, 128
    %64 = vxpose.xlu0.b32.cont [6/16] 0.0, 128
    %65 = vxpose.xlu0.b32.cont [7/16] 0.0, 128
    %66 = vxpose.xlu0.b32.cont [8/16] 0.0, 128
    %67 = vxpose.xlu0.b32.cont [9/16] 0.0, 128
    %68 = vxpose.xlu0.b32.cont [10/16] 0.0, 128
    %69 = vxpose.xlu0.b32.cont [11/16] 0.0, 128
    %70 = vxpose.xlu0.b32.cont [12/16] 0.0, 128
    %71 = vxpose.xlu0.b32.cont [13/16] 0.0, 128
    %72 = vxpose.xlu0.b32.cont [14/16] 0.0, 128
    %73 = vxpose.xlu0.b32.cont [15/16] 0.0, 128
    %74 = vxpose.xlu0.b32.end [16/16] 0.0, 128
    %v75 = vpop.trf.xlu0
    %v76 = vpop.trf.xlu0
    %v77 = vpop.trf.xlu0
    %v78 = vpop.trf.xlu0
    %v79 = vpop.trf.xlu0
    %v80 = vpop.trf.xlu0
    %v81 = vpop.trf.xlu0
    %v82 = vpop.trf.xlu0
    %v83 = vpop.trf.xlu0
    %v84 = vpop.trf.xlu0
    %v85 = vpop.trf.xlu0
    %v86 = vpop.trf.xlu0
    %v87 = vpop.trf.xlu0
    %v88 = vpop.trf.xlu0
    %v89 = vpop.trf.xlu0
    %v90 = vpop.trf.xlu0
    %vm91 = vcmask 31744
    %v93 = vsel %vm91, %v75, 0
    %v96 = vsel %vm91, %v76, 0
    %vm98 = vcmask 1043456
    %v100 = vsel %vm98, %v56, 0
    %102 = vmatprep.subr.mxu0 0.0
    %103 = vmatpush1.msra.mxu0 %v100
    %104 = vmatprep.subr.mxu0 0.0
    %105 = vmatpush1.msra.mxu0 0.0
    %106 = vmatprep.subr.mxu0 0.0
    %107 = vmatpush1.msra.mxu0 0.0
    %108 = vmatprep.subr.mxu0 0.0
    %109 = vmatpush1.msra.mxu0 0.0
    %110 = vmatprep.subr.mxu0 0.0
    %111 = vmatpush1.msra.mxu0 0.0
    %112 = vmatprep.subr.mxu0 0.0
    %113 = vmatpush1.msra.mxu0 0.0
    %114 = vmatprep.subr.mxu0 0.0
    %115 = vmatpush1.msra.mxu0 0.0
    %116 = vmatprep.subr.mxu0 0.0
    %117 = vmatpush1.msra.mxu0 0.0
    %118 = vmatprep.subr.mxu0 0.0
    %119 = vmatpush1.msra.mxu0 0.0
    %120 = vmatprep.subr.mxu0 0.0
    %121 = vmatpush1.msra.mxu0 0.0
    %122 = vmatprep.subr.mxu0 0.0
    %123 = vmatpush1.msra.mxu0 0.0
    %124 = vmatprep.subr.mxu0 0.0
    %125 = vmatpush1.msra.mxu0 0.0
    %126 = vmatprep.subr.mxu0 0.0
    %127 = vmatpush1.msra.mxu0 0.0
    %128 = vmatprep.subr.mxu0 0.0
    %129 = vmatpush1.msra.mxu0 0.0
    %130 = vmatprep.subr.mxu0 0.0
    %131 = vmatpush1.msra.mxu0 0.0
    %132 = vmatprep.subr.mxu0 0.0
    %133 = vmatpush1.msra.mxu0 0.0
    %134 = vmatprep.subr.mxu0 0.0
    %135 = vmatpush1.msra.mxu0 0.0
    %136 = vmatprep.subr.mxu0 0.0
    %137 = vmatpush1.msra.mxu0 0.0
    %138 = vmatprep.subr.mxu0 0.0
    %139 = vmatpush1.msra.mxu0 0.0
    %140 = vmatprep.subr.mxu0 0.0
    %141 = vmatpush1.msra.mxu0 0.0
    %142 = vmatprep.subr.mxu0 0.0
    %143 = vmatpush1.msra.mxu0 0.0
    %144 = vmatprep.subr.mxu0 0.0
    %145 = vmatpush1.msra.mxu0 0.0
    %146 = vmatprep.subr.mxu0 0.0
    %147 = vmatpush1.msra.mxu0 0.0
    %148 = vmatprep.subr.mxu0 0.0
    %149 = vmatpush1.msra.mxu0 0.0
    %150 = vmatprep.subr.mxu0 0.0
    %151 = vmatpush1.msra.mxu0 0.0
    %152 = vmatprep.subr.mxu0 0.0
    %153 = vmatpush1.msra.mxu0 0.0
    %154 = vmatprep.subr.mxu0 0.0
    %155 = vmatpush1.msra.mxu0 0.0
    %156 = vmatprep.subr.mxu0 0.0
    %157 = vmatpush1.msra.mxu0 0.0
    %158 = vmatprep.subr.mxu0 0.0
    %159 = vmatpush1.msra.mxu0 0.0
    %160 = vmatprep.subr.mxu0 0.0
    %161 = vmatpush1.msra.mxu0 0.0
    %162 = vmatprep.subr.mxu0 0.0
    %163 = vmatpush1.msra.mxu0 0.0
    %164 = vmatprep.subr.mxu0 0.0
    %165 = vmatpush1.msra.mxu0 0.0
    %166 = vmatprep.mubr.f32.mxu0 0.0
    %167 = vmatmul.mubr.f32.gmra.mrb[0].mxu0 %v93
    %v168 = vpop.f32.mrb[0].mxu0
    %v169 = vadd.f32 0.0, %v168
    %v170 = vpop.f32.mrb[0].mxu0
    %171 = vmatprep.mubr.f32.mxu0 0.0
    %172 = vmatmul.mubr.f32.gmra.mrb[0].mxu0 %v96
    %v173 = vpop.f32.mrb[0].mxu0
    %v174 = vadd.f32 0.0, %v173
    %v175 = vpop.f32.mrb[0].mxu0
    %176 = vdwg.mxu0
    %v177 = vld [vmem:[#allocation3] sm:$0xff]
    %v178 = vld [vmem:[#allocation3 + $0x8] sm:$0xff]
    %v179 = vstv %s55
    %vm180 = vcmp.ge.f32.partialorder %v177, %v179
    %vm181 = vcmp.ge.f32.partialorder %v178, %v179
    %v182 = vsel %vm180, 1, 0
    %v183 = vsel %vm181, 1, 0
    %v184 = vcvt.s32.f32 %v182
    %v185 = vcvt.s32.f32 %v183
    %v186 = vpack.c.bf16 %v185, %v184
    %v187 = vmul.f32 %v184, %v177
    %v188 = vmul.f32 %v185, %v178
    %vm189 = vcmask 130048
    %v190 = vsel %vm189, %v187, -inf
    %191 = vmax.xlane.f32.xlu0 %v190
    %v192 = vpop.xlane.xlu0 %191
    %v193 = vsel %vm189, %v188, -inf
    %194 = vmax.xlane.f32.xlu0 %v193
    %v195 = vpop.xlane.xlu0 %194
    %v196 = vsub.f32 %v187, %v192
    %v197 = vsub.f32 %v188, %v195
    %v198 = vmul.f32 %v196, 1.442695
    %v199 = vpow.pop %v198
    %v200 = vmul.f32 %v197, 1.442695
    %v201 = vpow.pop %v200
    %v202 = vsel %vm189, %v199, 0.0
    %203 = vadd.xlane.f32.xlu0 %v202
    %v204 = vpop.xlane.xlu0 %203
    %v205 = vsel %vm189, %v201, 0.0
    %206 = vadd.xlane.f32.xlu0 %v205
    %v207 = vpop.xlane.xlu0 %206
    %v208 = vrcp.pop %v204
    %v209 = vrcp.pop %v207
    %v210 = vmul.f32 %v199, %v208
    %v211 = vmul.f32 %v201, %v209
    %v212 = vlaneseq
    %v213 = vshrl.u32 %v212, 7
    %v214 = vsub.s32 0, %v213
    %v215 = vrot.slane %v57, %v214
    %v217 = vsel %vm189, %v210, 0
    %v220 = vsel %vm189, %v211, 0
    %222 = vmatprep.subr.mxu0 0.0
    %223 = vmatpush1.msra.mxu0 %v169
    %224 = vmatprep.subr.mxu0 0.0
    %225 = vmatpush1.msra.mxu0 %v174
    %226 = vmatprep.subr.mxu0 0.0
    %227 = vmatpush1.msra.mxu0 0.0
    %228 = vmatprep.subr.mxu0 0.0
    %229 = vmatpush1.msra.mxu0 0.0
    %230 = vmatprep.subr.mxu0 0.0
    %231 = vmatpush1.msra.mxu0 0.0
    %232 = vmatprep.subr.mxu0 0.0
    %233 = vmatpush1.msra.mxu0 0.0
    %234 = vmatprep.subr.mxu0 0.0
    %235 = vmatpush1.msra.mxu0 0.0
    %236 = vmatprep.subr.mxu0 0.0
    %237 = vmatpush1.msra.mxu0 0.0
    %238 = vmatprep.subr.mxu0 0.0
    %239 = vmatpush1.msra.mxu0 0.0
    %240 = vmatprep.subr.mxu0 0.0
    %241 = vmatpush1.msra.mxu0 0.0
    %242 = vmatprep.subr.mxu0 0.0
    %243 = vmatpush1.msra.mxu0 0.0
    %244 = vmatprep.subr.mxu0 0.0
    %245 = vmatpush1.msra.mxu0 0.0
    %246 = vmatprep.subr.mxu0 0.0
    %247 = vmatpush1.msra.mxu0 0.0
    %248 = vmatprep.subr.mxu0 0.0
    %249 = vmatpush1.msra.mxu0 0.0
    %250 = vmatprep.subr.mxu0 0.0
    %251 = vmatpush1.msra.mxu0 0.0
    %252 = vmatprep.subr.mxu0 0.0
    %253 = vmatpush1.msra.mxu0 0.0
    %254 = vmatprep.subr.mxu0 0.0
    %255 = vmatpush1.msra.mxu0 0.0
    %256 = vmatprep.subr.mxu0 0.0
    %257 = vmatpush1.msra.mxu0 0.0
    %258 = vmatprep.subr.mxu0 0.0
    %259 = vmatpush1.msra.mxu0 0.0
    %260 = vmatprep.subr.mxu0 0.0
    %261 = vmatpush1.msra.mxu0 0.0
    %262 = vmatprep.subr.mxu0 0.0
    %263 = vmatpush1.msra.mxu0 0.0
    %264 = vmatprep.subr.mxu0 0.0
    %265 = vmatpush1.msra.mxu0 0.0
    %266 = vmatprep.subr.mxu0 0.0
    %267 = vmatpush1.msra.mxu0 0.0
    %268 = vmatprep.subr.mxu0 0.0
    %269 = vmatpush1.msra.mxu0 0.0
    %270 = vmatprep.subr.mxu0 0.0
    %271 = vmatpush1.msra.mxu0 0.0
    %272 = vmatprep.subr.mxu0 0.0
    %273 = vmatpush1.msra.mxu0 0.0
    %274 = vmatprep.subr.mxu0 0.0
    %275 = vmatpush1.msra.mxu0 0.0
    %276 = vmatprep.subr.mxu0 0.0
    %277 = vmatpush1.msra.mxu0 0.0
    %278 = vmatprep.subr.mxu0 0.0
    %279 = vmatpush1.msra.mxu0 0.0
    %280 = vmatprep.subr.mxu0 0.0
    %281 = vmatpush1.msra.mxu0 0.0
    %282 = vmatprep.subr.mxu0 0.0
    %283 = vmatpush1.msra.mxu0 0.0
    %284 = vmatprep.subr.mxu0 0.0
    %285 = vmatpush1.msra.mxu0 0.0
    %286 = vmatprep.mubr.f32.mxu0 0.0
    %287 = vmatmul.mubr.f32.gmra.mrb[0].mxu0 %v217
    %v288 = vpop.f32.mrb[0].mxu0
    %v289 = vadd.f32 %v215, %v288
    %v290 = vpop.f32.mrb[0].mxu0
    %291 = vmatprep.mubr.f32.mxu0 0.0
    %292 = vmatmul.mubr.f32.gmra.mrb[0].mxu0 %v220
    %v293 = vpop.f32.mrb[0].mxu0
    %v294 = vadd.f32 %v215, %v293
    %v295 = vpop.f32.mrb[0].mxu0
    %296 = vdwg.mxu0
    %297 = vxpose.xlu0.b32.start [1/16] %v289, 128
    %298 = vxpose.xlu0.b32.cont [2/16] %v294, 128
    %299 = vxpose.xlu0.b32.cont [3/16] 0.0, 128
    %300 = vxpose.xlu0.b32.cont [4/16] 0.0, 128
    %301 = vxpose.xlu0.b32.cont [5/16] 0.0, 128
    %302 = vxpose.xlu0.b32.cont [6/16] 0.0, 128
    %303 = vxpose.xlu0.b32.cont [7/16] 0.0, 128
    %304 = vxpose.xlu0.b32.cont [8/16] 0.0, 128
    %305 = vxpose.xlu0.b32.cont [9/16] 0.0, 128
    %306 = vxpose.xlu0.b32.cont [10/16] 0.0, 128
    %307 = vxpose.xlu0.b32.cont [11/16] 0.0, 128
    %308 = vxpose.xlu0.b32.cont [12/16] 0.0, 128
    %309 = vxpose.xlu0.b32.cont [13/16] 0.0, 128
    %310 = vxpose.xlu0.b32.cont [14/16] 0.0, 128
    %311 = vxpose.xlu0.b32.cont [15/16] 0.0, 128
    %312 = vxpose.xlu0.b32.end [16/16] 0.0, 128
    %v313 = vpop.trf.xlu0
    %v314 = vpop.trf.xlu0
    %v315 = vpop.trf.xlu0
    %v316 = vpop.trf.xlu0
    %v317 = vpop.trf.xlu0
    %v318 = vpop.trf.xlu0
    %v319 = vpop.trf.xlu0
    %v320 = vpop.trf.xlu0
    %v321 = vpop.trf.xlu0
    %v322 = vpop.trf.xlu0
    %v323 = vpop.trf.xlu0
    %v324 = vpop.trf.xlu0
    %v325 = vpop.trf.xlu0
    %v326 = vpop.trf.xlu0
    %v327 = vpop.trf.xlu0
    %v328 = vpop.trf.xlu0
    %vm329 = vcmask 125952
    %330 = vst.msk [vmem:[#allocation8] sm:$0xf] %vm329, %v313
    %v332 = vsel %vm189, %v186, 0
    %334 = vmatprep.subr.bf16.mxu0 0
    %335 = vmatpush1.bf16.msra.mxu0 %v186
    %336 = vmatprep.subr.bf16.mxu0 0
    %337 = vmatpush1.bf16.msra.mxu0 0
    %338 = vmatprep.subr.bf16.mxu0 0
    %339 = vmatpush1.bf16.msra.mxu0 0
    %340 = vmatprep.subr.bf16.mxu0 0
    %341 = vmatpush1.bf16.msra.mxu0 0
    %342 = vmatprep.subr.bf16.mxu0 0
    %343 = vmatpush1.bf16.msra.mxu0 0
    %344 = vmatprep.subr.bf16.mxu0 0
    %345 = vmatpush1.bf16.msra.mxu0 0
    %346 = vmatprep.subr.bf16.mxu0 0
    %347 = vmatpush1.bf16.msra.mxu0 0
    %348 = vmatprep.subr.bf16.mxu0 0
    %349 = vmatpush1.bf16.msra.mxu0 0
    %350 = vmatprep.subr.bf16.mxu0 0
    %351 = vmatpush1.bf16.msra.mxu0 0
    %352 = vmatprep.subr.bf16.mxu0 0
    %353 = vmatpush1.bf16.msra.mxu0 0
    %354 = vmatprep.subr.bf16.mxu0 0
    %355 = vmatpush1.bf16.msra.mxu0 0
    %356 = vmatprep.subr.bf16.mxu0 0
    %357 = vmatpush1.bf16.msra.mxu0 0
    %358 = vmatprep.subr.bf16.mxu0 0
    %359 = vmatpush1.bf16.msra.mxu0 0
    %360 = vmatprep.subr.bf16.mxu0 0
    %361 = vmatpush1.bf16.msra.mxu0 0
    %362 = vmatprep.subr.bf16.mxu0 0
    %363 = vmatpush1.bf16.msra.mxu0 0
    %364 = vmatprep.subr.bf16.mxu0 0
    %365 = vmatpush1.bf16.msra.mxu0 0
    %366 = vmatprep.mubr.bf16.mxu0 0
    %367 = vmatmul.mubr.bf16.gmra.mrb[0].mxu0 %v332
    %v368 = vpop.f32.mrb[0].mxu0
    %v369 = vadd.f32 0.0, %v368
    %v370 = vpop.f32.mrb[0].mxu0
    %v371 = vpop.f32.mrb[0].mxu0
    %v372 = vadd.f32 0.0, %v371
    %v373 = vpop.f32.mrb[0].mxu0
    %374 = vdwg.mxu0
    %v375 = vmul.f32 %v369, %v177
    %v376 = vmul.f32 %v372, %v178
    %v377 = vsel %vm189, %v375, -inf
    %378 = vmax.xlane.f32.xlu0 %v377
    %v379 = vpop.xlane.xlu0 %378
    %v380 = vsel %vm189, %v376, -inf
    %381 = vmax.xlane.f32.xlu0 %v380
    %v382 = vpop.xlane.xlu0 %381
    %v383 = vsub.f32 %v375, %v379
    %v384 = vsub.f32 %v376, %v382
    %v385 = vmul.f32 %v383, 1.442695
    %v386 = vpow.pop %v385
    %v387 = vmul.f32 %v384, 1.442695
    %v388 = vpow.pop %v387
    %v389 = vsel %vm189, %v386, 0.0
    %390 = vadd.xlane.f32.xlu0 %v389
    %v391 = vpop.xlane.xlu0 %390
    %v392 = vsel %vm189, %v388, 0.0
    %393 = vadd.xlane.f32.xlu0 %v392
    %v394 = vpop.xlane.xlu0 %393
    %v395 = vrcp.pop %v391
    %v396 = vrcp.pop %v394
    %v397 = vmul.f32 %v386, %v395
    %v398 = vmul.f32 %v388, %v396
    %v399 = vlaneseq
    %v400 = vshrl.u32 %v399, 7
    %v401 = vsub.s32 1, %v400
    %v402 = vrot.slane %v57, %v401
    %405 = vrot.lane.b32.xlu0 %v169, 124
    %v406 = vpop.permute.xlu0 %405
    %407 = vrot.lane.b32.xlu0 %v174, 124
    %v408 = vpop.permute.xlu0 %407
    %v412 = vsel %vm189, %v397, 0
    %v415 = vsel %vm189, %v398, 0
    %417 = vmatprep.subr.mxu0 0.0
    %418 = vmatpush1.msra.mxu0 %v406
    %419 = vmatprep.subr.mxu0 0.0
    %420 = vmatpush1.msra.mxu0 %v408
    %421 = vmatprep.subr.mxu0 0.0
    %422 = vmatpush1.msra.mxu0 0.0
    %423 = vmatprep.subr.mxu0 0.0
    %424 = vmatpush1.msra.mxu0 0.0
    %425 = vmatprep.subr.mxu0 0.0
    %426 = vmatpush1.msra.mxu0 0.0
    %427 = vmatprep.subr.mxu0 0.0
    %428 = vmatpush1.msra.mxu0 0.0
    %429 = vmatprep.subr.mxu0 0.0
    %430 = vmatpush1.msra.mxu0 0.0
    %431 = vmatprep.subr.mxu0 0.0
    %432 = vmatpush1.msra.mxu0 0.0
    %433 = vmatprep.subr.mxu0 0.0
    %434 = vmatpush1.msra.mxu0 0.0
    %435 = vmatprep.subr.mxu0 0.0
    %436 = vmatpush1.msra.mxu0 0.0
    %437 = vmatprep.subr.mxu0 0.0
    %438 = vmatpush1.msra.mxu0 0.0
    %439 = vmatprep.subr.mxu0 0.0
    %440 = vmatpush1.msra.mxu0 0.0
    %441 = vmatprep.subr.mxu0 0.0
    %442 = vmatpush1.msra.mxu0 0.0
    %443 = vmatprep.subr.mxu0 0.0
    %444 = vmatpush1.msra.mxu0 0.0
    %445 = vmatprep.subr.mxu0 0.0
    %446 = vmatpush1.msra.mxu0 0.0
    %447 = vmatprep.subr.mxu0 0.0
    %448 = vmatpush1.msra.mxu0 0.0
    %449 = vmatprep.subr.mxu0 0.0
    %450 = vmatpush1.msra.mxu0 0.0
    %451 = vmatprep.subr.mxu0 0.0
    %452 = vmatpush1.msra.mxu0 0.0
    %453 = vmatprep.subr.mxu0 0.0
    %454 = vmatpush1.msra.mxu0 0.0
    %455 = vmatprep.subr.mxu0 0.0
    %456 = vmatpush1.msra.mxu0 0.0
    %457 = vmatprep.subr.mxu0 0.0
    %458 = vmatpush1.msra.mxu0 0.0
    %459 = vmatprep.subr.mxu0 0.0
    %460 = vmatpush1.msra.mxu0 0.0
    %461 = vmatprep.subr.mxu0 0.0
    %462 = vmatpush1.msra.mxu0 0.0
    %463 = vmatprep.subr.mxu0 0.0
    %464 = vmatpush1.msra.mxu0 0.0
    %465 = vmatprep.subr.mxu0 0.0
    %466 = vmatpush1.msra.mxu0 0.0
    %467 = vmatprep.subr.mxu0 0.0
    %468 = vmatpush1.msra.mxu0 0.0
    %469 = vmatprep.subr.mxu0 0.0
    %470 = vmatpush1.msra.mxu0 0.0
    %471 = vmatprep.subr.mxu0 0.0
    %472 = vmatpush1.msra.mxu0 0.0
    %473 = vmatprep.subr.mxu0 0.0
    %474 = vmatpush1.msra.mxu0 0.0
    %475 = vmatprep.subr.mxu0 0.0
    %476 = vmatpush1.msra.mxu0 0.0
    %477 = vmatprep.subr.mxu0 0.0
    %478 = vmatpush1.msra.mxu0 0.0
    %479 = vmatprep.subr.mxu0 0.0
    %480 = vmatpush1.msra.mxu0 0.0
    %481 = vmatprep.mubr.f32.mxu0 0.0
    %482 = vmatmul.mubr.f32.gmra.mrb[0].mxu0 %v412
    %v483 = vpop.f32.mrb[0].mxu0
    %v484 = vadd.f32 %v402, %v483
    %v485 = vpop.f32.mrb[0].mxu0
    %486 = vmatprep.mubr.f32.mxu0 0.0
    %487 = vmatmul.mubr.f32.gmra.mrb[0].mxu0 %v415
    %v488 = vpop.f32.mrb[0].mxu0
    %v489 = vadd.f32 %v402, %v488
    %v490 = vpop.f32.mrb[0].mxu0
    %491 = vdwg.mxu0
    %492 = vxpose.xlu0.b32.start [1/16] %v484, 128
    %493 = vxpose.xlu0.b32.cont [2/16] %v489, 128
    %494 = vxpose.xlu0.b32.cont [3/16] 0.0, 128
    %495 = vxpose.xlu0.b32.cont [4/16] 0.0, 128
    %496 = vxpose.xlu0.b32.cont [5/16] 0.0, 128
    %497 = vxpose.xlu0.b32.cont [6/16] 0.0, 128
    %498 = vxpose.xlu0.b32.cont [7/16] 0.0, 128
    %499 = vxpose.xlu0.b32.cont [8/16] 0.0, 128
    %500 = vxpose.xlu0.b32.cont [9/16] 0.0, 128
    %501 = vxpose.xlu0.b32.cont [10/16] 0.0, 128
    %502 = vxpose.xlu0.b32.cont [11/16] 0.0, 128
    %503 = vxpose.xlu0.b32.cont [12/16] 0.0, 128
    %504 = vxpose.xlu0.b32.cont [13/16] 0.0, 128
    %505 = vxpose.xlu0.b32.cont [14/16] 0.0, 128
    %506 = vxpose.xlu0.b32.cont [15/16] 0.0, 128
    %507 = vxpose.xlu0.b32.end [16/16] 0.0, 128
    %v508 = vpop.trf.xlu0
    %v509 = vpop.trf.xlu0
    %v510 = vpop.trf.xlu0
    %v511 = vpop.trf.xlu0
    %v512 = vpop.trf.xlu0
    %v513 = vpop.trf.xlu0
    %v514 = vpop.trf.xlu0
    %v515 = vpop.trf.xlu0
    %v516 = vpop.trf.xlu0
    %v517 = vpop.trf.xlu0
    %v518 = vpop.trf.xlu0
    %v519 = vpop.trf.xlu0
    %v520 = vpop.trf.xlu0
    %v521 = vpop.trf.xlu0
    %v522 = vpop.trf.xlu0
    %v523 = vpop.trf.xlu0
    %524 = vst.msk [vmem:[#allocation9] sm:$0xf] %vm329, %v508
    %v525 = vpack.c.bf16 %v372, %v369
    %v527 = vsel %vm189, %v525, 0
    %529 = vmatprep.subr.bf16.mxu0 0
    %530 = vmatpush1.bf16.msra.mxu0 %v186
    %531 = vmatprep.subr.bf16.mxu0 0
    %532 = vmatpush1.bf16.msra.mxu0 0
    %533 = vmatprep.subr.bf16.mxu0 0
    %534 = vmatpush1.bf16.msra.mxu0 0
    %535 = vmatprep.subr.bf16.mxu0 0
    %536 = vmatpush1.bf16.msra.mxu0 0
    %537 = vmatprep.subr.bf16.mxu0 0
    %538 = vmatpush1.bf16.msra.mxu0 0
    %539 = vmatprep.subr.bf16.mxu0 0
    %540 = vmatpush1.bf16.msra.mxu0 0
    %541 = vmatprep.subr.bf16.mxu0 0
    %542 = vmatpush1.bf16.msra.mxu0 0
    %543 = vmatprep.subr.bf16.mxu0 0
    %544 = vmatpush1.bf16.msra.mxu0 0
    %545 = vmatprep.subr.bf16.mxu0 0
    %546 = vmatpush1.bf16.msra.mxu0 0
    %547 = vmatprep.subr.bf16.mxu0 0
    %548 = vmatpush1.bf16.msra.mxu0 0
    %549 = vmatprep.subr.bf16.mxu0 0
    %550 = vmatpush1.bf16.msra.mxu0 0
    %551 = vmatprep.subr.bf16.mxu0 0
    %552 = vmatpush1.bf16.msra.mxu0 0
    %553 = vmatprep.subr.bf16.mxu0 0
    %554 = vmatpush1.bf16.msra.mxu0 0
    %555 = vmatprep.subr.bf16.mxu0 0
    %556 = vmatpush1.bf16.msra.mxu0 0
    %557 = vmatprep.subr.bf16.mxu0 0
    %558 = vmatpush1.bf16.msra.mxu0 0
    %559 = vmatprep.subr.bf16.mxu0 0
    %560 = vmatpush1.bf16.msra.mxu0 0
    %561 = vmatprep.mubr.bf16.mxu0 0
    %562 = vmatmul.mubr.bf16.gmra.mrb[0].mxu0 %v527
    %v563 = vpop.f32.mrb[0].mxu0
    %v564 = vadd.f32 0.0, %v563
    %v565 = vpop.f32.mrb[0].mxu0
    %v566 = vpop.f32.mrb[0].mxu0
    %v567 = vadd.f32 0.0, %v566
    %v568 = vpop.f32.mrb[0].mxu0
    %569 = vdwg.mxu0
    %v570 = vmul.f32 %v564, %v177
    %v571 = vmul.f32 %v567, %v178
    %v572 = vsel %vm189, %v570, -inf
    %573 = vmax.xlane.f32.xlu0 %v572
    %v574 = vpop.xlane.xlu0 %573
    %v575 = vsel %vm189, %v571, -inf
    %576 = vmax.xlane.f32.xlu0 %v575
    %v577 = vpop.xlane.xlu0 %576
    %v578 = vsub.f32 %v570, %v574
    %v579 = vsub.f32 %v571, %v577
    %v580 = vmul.f32 %v578, 1.442695
    %v581 = vpow.pop %v580
    %v582 = vmul.f32 %v579, 1.442695
    %v583 = vpow.pop %v582
    %v584 = vsel %vm189, %v581, 0.0
    %585 = vadd.xlane.f32.xlu0 %v584
    %v586 = vpop.xlane.xlu0 %585
    %v587 = vsel %vm189, %v583, 0.0
    %588 = vadd.xlane.f32.xlu0 %v587
    %v589 = vpop.xlane.xlu0 %588
    %v590 = vrcp.pop %v586
    %v591 = vrcp.pop %v589
    %v592 = vmul.f32 %v581, %v590
    %v593 = vmul.f32 %v583, %v591
    %v594 = vlaneseq
    %v595 = vshrl.u32 %v594, 7
    %v596 = vsub.s32 2, %v595
    %v597 = vrot.slane %v57, %v596
    %598 = vrot.lane.b32.xlu0 %v169, 120
    %v599 = vpop.permute.xlu0 %598
    %600 = vrot.lane.b32.xlu0 %v174, 120
    %v601 = vpop.permute.xlu0 %600
    %v605 = vsel %vm189, %v592, 0
    %v608 = vsel %vm189, %v593, 0
    %610 = vmatprep.subr.mxu0 0.0
    %611 = vmatpush1.msra.mxu0 %v599
    %612 = vmatprep.subr.mxu0 0.0
    %613 = vmatpush1.msra.mxu0 %v601
    %614 = vmatprep.subr.mxu0 0.0
    %615 = vmatpush1.msra.mxu0 0.0
    %616 = vmatprep.subr.mxu0 0.0
    %617 = vmatpush1.msra.mxu0 0.0
    %618 = vmatprep.subr.mxu0 0.0
    %619 = vmatpush1.msra.mxu0 0.0
    %620 = vmatprep.subr.mxu0 0.0
    %621 = vmatpush1.msra.mxu0 0.0
    %622 = vmatprep.subr.mxu0 0.0
    %623 = vmatpush1.msra.mxu0 0.0
    %624 = vmatprep.subr.mxu0 0.0
    %625 = vmatpush1.msra.mxu0 0.0
    %626 = vmatprep.subr.mxu0 0.0
    %627 = vmatpush1.msra.mxu0 0.0
    %628 = vmatprep.subr.mxu0 0.0
    %629 = vmatpush1.msra.mxu0 0.0
    %630 = vmatprep.subr.mxu0 0.0
    %631 = vmatpush1.msra.mxu0 0.0
    %632 = vmatprep.subr.mxu0 0.0
    %633 = vmatpush1.msra.mxu0 0.0
    %634 = vmatprep.subr.mxu0 0.0
    %635 = vmatpush1.msra.mxu0 0.0
    %636 = vmatprep.subr.mxu0 0.0
    %637 = vmatpush1.msra.mxu0 0.0
    %638 = vmatprep.subr.mxu0 0.0
    %639 = vmatpush1.msra.mxu0 0.0
    %640 = vmatprep.subr.mxu0 0.0
    %641 = vmatpush1.msra.mxu0 0.0
    %642 = vmatprep.subr.mxu0 0.0
    %643 = vmatpush1.msra.mxu0 0.0
    %644 = vmatprep.subr.mxu0 0.0
    %645 = vmatpush1.msra.mxu0 0.0
    %646 = vmatprep.subr.mxu0 0.0
    %647 = vmatpush1.msra.mxu0 0.0
    %648 = vmatprep.subr.mxu0 0.0
    %649 = vmatpush1.msra.mxu0 0.0
    %650 = vmatprep.subr.mxu0 0.0
    %651 = vmatpush1.msra.mxu0 0.0
    %652 = vmatprep.subr.mxu0 0.0
    %653 = vmatpush1.msra.mxu0 0.0
    %654 = vmatprep.subr.mxu0 0.0
    %655 = vmatpush1.msra.mxu0 0.0
    %656 = vmatprep.subr.mxu0 0.0
    %657 = vmatpush1.msra.mxu0 0.0
    %658 = vmatprep.subr.mxu0 0.0
    %659 = vmatpush1.msra.mxu0 0.0
    %660 = vmatprep.subr.mxu0 0.0
    %661 = vmatpush1.msra.mxu0 0.0
    %662 = vmatprep.subr.mxu0 0.0
    %663 = vmatpush1.msra.mxu0 0.0
    %664 = vmatprep.subr.mxu0 0.0
    %665 = vmatpush1.msra.mxu0 0.0
    %666 = vmatprep.subr.mxu0 0.0
    %667 = vmatpush1.msra.mxu0 0.0
    %668 = vmatprep.subr.mxu0 0.0
    %669 = vmatpush1.msra.mxu0 0.0
    %670 = vmatprep.subr.mxu0 0.0
    %671 = vmatpush1.msra.mxu0 0.0
    %672 = vmatprep.subr.mxu0 0.0
    %673 = vmatpush1.msra.mxu0 0.0
    %674 = vmatprep.mubr.f32.mxu0 0.0
    %675 = vmatmul.mubr.f32.gmra.mrb[0].mxu0 %v605
    %v676 = vpop.f32.mrb[0].mxu0
    %v677 = vadd.f32 %v597, %v676
    %v678 = vpop.f32.mrb[0].mxu0
    %679 = vmatprep.mubr.f32.mxu0 0.0
    %680 = vmatmul.mubr.f32.gmra.mrb[0].mxu0 %v608
    %v681 = vpop.f32.mrb[0].mxu0
    %v682 = vadd.f32 %v597, %v681
    %v683 = vpop.f32.mrb[0].mxu0
    %684 = vdwg.mxu0
    %685 = vxpose.xlu0.b32.start [1/16] %v677, 128
    %686 = vxpose.xlu0.b32.cont [2/16] %v682, 128
    %687 = vxpose.xlu0.b32.cont [3/16] 0.0, 128
    %688 = vxpose.xlu0.b32.cont [4/16] 0.0, 128
    %689 = vxpose.xlu0.b32.cont [5/16] 0.0, 128
    %690 = vxpose.xlu0.b32.cont [6/16] 0.0, 128
    %691 = vxpose.xlu0.b32.cont [7/16] 0.0, 128
    %692 = vxpose.xlu0.b32.cont [8/16] 0.0, 128
    %693 = vxpose.xlu0.b32.cont [9/16] 0.0, 128
    %694 = vxpose.xlu0.b32.cont [10/16] 0.0, 128
    %695 = vxpose.xlu0.b32.cont [11/16] 0.0, 128
    %696 = vxpose.xlu0.b32.cont [12/16] 0.0, 128
    %697 = vxpose.xlu0.b32.cont [13/16] 0.0, 128
    %698 = vxpose.xlu0.b32.cont [14/16] 0.0, 128
    %699 = vxpose.xlu0.b32.cont [15/16] 0.0, 128
    %700 = vxpose.xlu0.b32.end [16/16] 0.0, 128
    %v701 = vpop.trf.xlu0
    %v702 = vpop.trf.xlu0
    %v703 = vpop.trf.xlu0
    %v704 = vpop.trf.xlu0
    %v705 = vpop.trf.xlu0
    %v706 = vpop.trf.xlu0
    %v707 = vpop.trf.xlu0
    %v708 = vpop.trf.xlu0
    %v709 = vpop.trf.xlu0
    %v710 = vpop.trf.xlu0
    %v711 = vpop.trf.xlu0
    %v712 = vpop.trf.xlu0
    %v713 = vpop.trf.xlu0
    %v714 = vpop.trf.xlu0
    %v715 = vpop.trf.xlu0
    %v716 = vpop.trf.xlu0
    %717 = vst.msk [vmem:[#allocation11] sm:$0xf] %vm329, %v701
    %s718 = scalar_lea.vmem [#allocation6], 4
    %v719 = vld [vmem:[%s718] sm:$0xf]
    %720 = vxpose.xlu0.b32.start [1/16] %v719, 128
    %721 = vxpose.xlu0.b32.cont [2/16] 0.0, 128
    %722 = vxpose.xlu0.b32.cont [3/16] 0.0, 128
    %723 = vxpose.xlu0.b32.cont [4/16] 0.0, 128
    %724 = vxpose.xlu0.b32.cont [5/16] 0.0, 128
    %725 = vxpose.xlu0.b32.cont [6/16] 0.0, 128
    %726 = vxpose.xlu0.b32.cont [7/16] 0.0, 128
    %727 = vxpose.xlu0.b32.cont [8/16] 0.0, 128
    %728 = vxpose.xlu0.b32.cont [9/16] 0.0, 128
    %729 = vxpose.xlu0.b32.cont [10/16] 0.0, 128
    %730 = vxpose.xlu0.b32.cont [11/16] 0.0, 128
    %731 = vxpose.xlu0.b32.cont [12/16] 0.0, 128
    %732 = vxpose.xlu0.b32.cont [13/16] 0.0, 128
    %733 = vxpose.xlu0.b32.cont [14/16] 0.0, 128
    %734 = vxpose.xlu0.b32.cont [15/16] 0.0, 128
    %735 = vxpose.xlu0.b32.end [16/16] 0.0, 128
    %v736 = vpop.trf.xlu0
    %v737 = vpop.trf.xlu0
    %v738 = vpop.trf.xlu0
    %v739 = vpop.trf.xlu0
    %v740 = vpop.trf.xlu0
    %v741 = vpop.trf.xlu0
    %v742 = vpop.trf.xlu0
    %v743 = vpop.trf.xlu0
    %v744 = vpop.trf.xlu0
    %v745 = vpop.trf.xlu0
    %v746 = vpop.trf.xlu0
    %v747 = vpop.trf.xlu0
    %v748 = vpop.trf.xlu0
    %v749 = vpop.trf.xlu0
    %v750 = vpop.trf.xlu0
    %v751 = vpop.trf.xlu0
    %v753 = vsel %vm91, %v736, 0
    %v756 = vsel %vm91, %v737, 0
    %758 = vmatprep.subr.mxu0 0.0
    %759 = vmatpush1.msra.mxu0 %v100
    %760 = vmatprep.subr.mxu0 0.0
    %761 = vmatpush1.msra.mxu0 0.0
    %762 = vmatprep.subr.mxu0 0.0
    %763 = vmatpush1.msra.mxu0 0.0
    %764 = vmatprep.subr.mxu0 0.0
    %765 = vmatpush1.msra.mxu0 0.0
    %766 = vmatprep.subr.mxu0 0.0
    %767 = vmatpush1.msra.mxu0 0.0
    %768 = vmatprep.subr.mxu0 0.0
    %769 = vmatpush1.msra.mxu0 0.0
    %770 = vmatprep.subr.mxu0 0.0
    %771 = vmatpush1.msra.mxu0 0.0
    %772 = vmatprep.subr.mxu0 0.0
    %773 = vmatpush1.msra.mxu0 0.0
    %774 = vmatprep.subr.mxu0 0.0
    %775 = vmatpush1.msra.mxu0 0.0
    %776 = vmatprep.subr.mxu0 0.0
    %777 = vmatpush1.msra.mxu0 0.0
    %778 = vmatprep.subr.mxu0 0.0
    %779 = vmatpush1.msra.mxu0 0.0
    %780 = vmatprep.subr.mxu0 0.0
    %781 = vmatpush1.msra.mxu0 0.0
    %782 = vmatprep.subr.mxu0 0.0
    %783 = vmatpush1.msra.mxu0 0.0
    %784 = vmatprep.subr.mxu0 0.0
    %785 = vmatpush1.msra.mxu0 0.0
    %786 = vmatprep.subr.mxu0 0.0
    %787 = vmatpush1.msra.mxu0 0.0
    %788 = vmatprep.subr.mxu0 0.0
    %789 = vmatpush1.msra.mxu0 0.0
    %790 = vmatprep.subr.mxu0 0.0
    %791 = vmatpush1.msra.mxu0 0.0
    %792 = vmatprep.subr.mxu0 0.0
    %793 = vmatpush1.msra.mxu0 0.0
    %794 = vmatprep.subr.mxu0 0.0
    %795 = vmatpush1.msra.mxu0 0.0
    %796 = vmatprep.subr.mxu0 0.0
    %797 = vmatpush1.msra.mxu0 0.0
    %798 = vmatprep.subr.mxu0 0.0
    %799 = vmatpush1.msra.mxu0 0.0
    %800 = vmatprep.subr.mxu0 0.0
    %801 = vmatpush1.msra.mxu0 0.0
    %802 = vmatprep.subr.mxu0 0.0
    %803 = vmatpush1.msra.mxu0 0.0
    %804 = vmatprep.subr.mxu0 0.0
    %805 = vmatpush1.msra.mxu0 0.0
    %806 = vmatprep.subr.mxu0 0.0
    %807 = vmatpush1.msra.mxu0 0.0
    %808 = vmatprep.subr.mxu0 0.0
    %809 = vmatpush1.msra.mxu0 0.0
    %810 = vmatprep.subr.mxu0 0.0
    %811 = vmatpush1.msra.mxu0 0.0
    %812 = vmatprep.subr.mxu0 0.0
    %813 = vmatpush1.msra.mxu0 0.0
    %814 = vmatprep.subr.mxu0 0.0
    %815 = vmatpush1.msra.mxu0 0.0
    %816 = vmatprep.subr.mxu0 0.0
    %817 = vmatpush1.msra.mxu0 0.0
    %818 = vmatprep.subr.mxu0 0.0
    %819 = vmatpush1.msra.mxu0 0.0
    %820 = vmatprep.subr.mxu0 0.0
    %821 = vmatpush1.msra.mxu0 0.0
    %822 = vmatprep.mubr.f32.mxu0 0.0
    %823 = vmatmul.mubr.f32.gmra.mrb[0].mxu0 %v753
    %v824 = vpop.f32.mrb[0].mxu0
    %v825 = vadd.f32 0.0, %v824
    %v826 = vpop.f32.mrb[0].mxu0
    %827 = vmatprep.mubr.f32.mxu0 0.0
    %828 = vmatmul.mubr.f32.gmra.mrb[0].mxu0 %v756
    %v829 = vpop.f32.mrb[0].mxu0
    %v830 = vadd.f32 0.0, %v829
    %v831 = vpop.f32.mrb[0].mxu0
    %832 = vdwg.mxu0
    %s833 = scalar_lea.vmem [#allocation3], 16
    %v834 = vld [vmem:[%s833] sm:$0xff]
    %v835 = vld [vmem:[%s833 + $0x8] sm:$0xff]
    %vm836 = vcmp.ge.f32.partialorder %v834, %v179
    %vm837 = vcmp.ge.f32.partialorder %v835, %v179
    %v838 = vsel %vm836, 1, 0
    %v839 = vsel %vm837, 1, 0
    %v840 = vcvt.s32.f32 %v838
    %v841 = vcvt.s32.f32 %v839
    %v842 = vpack.c.bf16 %v841, %v840
    %v843 = vmul.f32 %v840, %v834
    %v844 = vmul.f32 %v841, %v835
    %v845 = vsel %vm189, %v843, -inf
    %846 = vmax.xlane.f32.xlu0 %v845
    %v847 = vpop.xlane.xlu0 %846
    %v848 = vsel %vm189, %v844, -inf
    %849 = vmax.xlane.f32.xlu0 %v848
    %v850 = vpop.xlane.xlu0 %849
    %v851 = vsub.f32 %v843, %v847
    %v852 = vsub.f32 %v844, %v850
    %v853 = vmul.f32 %v851, 1.442695
    %v854 = vpow.pop %v853
    %v855 = vmul.f32 %v852, 1.442695
    %v856 = vpow.pop %v855
    %v857 = vsel %vm189, %v854, 0.0
    %858 = vadd.xlane.f32.xlu0 %v857
    %v859 = vpop.xlane.xlu0 %858
    %v860 = vsel %vm189, %v856, 0.0
    %861 = vadd.xlane.f32.xlu0 %v860
    %v862 = vpop.xlane.xlu0 %861
    %v863 = vrcp.pop %v859
    %v864 = vrcp.pop %v862
    %v865 = vmul.f32 %v854, %v863
    %v866 = vmul.f32 %v856, %v864
    %v868 = vsel %vm189, %v865, 0
    %v871 = vsel %vm189, %v866, 0
    %873 = vmatprep.subr.mxu0 0.0
    %874 = vmatpush1.msra.mxu0 %v825
    %875 = vmatprep.subr.mxu0 0.0
    %876 = vmatpush1.msra.mxu0 %v830
    %877 = vmatprep.subr.mxu0 0.0
    %878 = vmatpush1.msra.mxu0 0.0
    %879 = vmatprep.subr.mxu0 0.0
    %880 = vmatpush1.msra.mxu0 0.0
    %881 = vmatprep.subr.mxu0 0.0
    %882 = vmatpush1.msra.mxu0 0.0
    %883 = vmatprep.subr.mxu0 0.0
    %884 = vmatpush1.msra.mxu0 0.0
    %885 = vmatprep.subr.mxu0 0.0
    %886 = vmatpush1.msra.mxu0 0.0
    %887 = vmatprep.subr.mxu0 0.0
    %888 = vmatpush1.msra.mxu0 0.0
    %889 = vmatprep.subr.mxu0 0.0
    %890 = vmatpush1.msra.mxu0 0.0
    %891 = vmatprep.subr.mxu0 0.0
    %892 = vmatpush1.msra.mxu0 0.0
    %893 = vmatprep.subr.mxu0 0.0
    %894 = vmatpush1.msra.mxu0 0.0
    %895 = vmatprep.subr.mxu0 0.0
    %896 = vmatpush1.msra.mxu0 0.0
    %897 = vmatprep.subr.mxu0 0.0
    %898 = vmatpush1.msra.mxu0 0.0
    %899 = vmatprep.subr.mxu0 0.0
    %900 = vmatpush1.msra.mxu0 0.0
    %901 = vmatprep.subr.mxu0 0.0
    %902 = vmatpush1.msra.mxu0 0.0
    %903 = vmatprep.subr.mxu0 0.0
    %904 = vmatpush1.msra.mxu0 0.0
    %905 = vmatprep.subr.mxu0 0.0
    %906 = vmatpush1.msra.mxu0 0.0
    %907 = vmatprep.subr.mxu0 0.0
    %908 = vmatpush1.msra.mxu0 0.0
    %909 = vmatprep.subr.mxu0 0.0
    %910 = vmatpush1.msra.mxu0 0.0
    %911 = vmatprep.subr.mxu0 0.0
    %912 = vmatpush1.msra.mxu0 0.0
    %913 = vmatprep.subr.mxu0 0.0
    %914 = vmatpush1.msra.mxu0 0.0
    %915 = vmatprep.subr.mxu0 0.0
    %916 = vmatpush1.msra.mxu0 0.0
    %917 = vmatprep.subr.mxu0 0.0
    %918 = vmatpush1.msra.mxu0 0.0
    %919 = vmatprep.subr.mxu0 0.0
    %920 = vmatpush1.msra.mxu0 0.0
    %921 = vmatprep.subr.mxu0 0.0
    %922 = vmatpush1.msra.mxu0 0.0
    %923 = vmatprep.subr.mxu0 0.0
    %924 = vmatpush1.msra.mxu0 0.0
    %925 = vmatprep.subr.mxu0 0.0
    %926 = vmatpush1.msra.mxu0 0.0
    %927 = vmatprep.subr.mxu0 0.0
    %928 = vmatpush1.msra.mxu0 0.0
    %929 = vmatprep.subr.mxu0 0.0
    %930 = vmatpush1.msra.mxu0 0.0
    %931 = vmatprep.subr.mxu0 0.0
    %932 = vmatpush1.msra.mxu0 0.0
    %933 = vmatprep.subr.mxu0 0.0
    %934 = vmatpush1.msra.mxu0 0.0
    %935 = vmatprep.subr.mxu0 0.0
    %936 = vmatpush1.msra.mxu0 0.0
    %937 = vmatprep.mubr.f32.mxu0 0.0
    %938 = vmatmul.mubr.f32.gmra.mrb[0].mxu0 %v868
    %v939 = vpop.f32.mrb[0].mxu0
    %v940 = vadd.f32 %v215, %v939
    %v941 = vpop.f32.mrb[0].mxu0
    %942 = vmatprep.mubr.f32.mxu0 0.0
    %943 = vmatmul.mubr.f32.gmra.mrb[0].mxu0 %v871
    %v944 = vpop.f32.mrb[0].mxu0
    %v945 = vadd.f32 %v215, %v944
    %v946 = vpop.f32.mrb[0].mxu0
    %947 = vdwg.mxu0
    %948 = vxpose.xlu0.b32.start [1/16] %v940, 128
    %949 = vxpose.xlu0.b32.cont [2/16] %v945, 128
    %950 = vxpose.xlu0.b32.cont [3/16] 0.0, 128
    %951 = vxpose.xlu0.b32.cont [4/16] 0.0, 128
    %952 = vxpose.xlu0.b32.cont [5/16] 0.0, 128
    %953 = vxpose.xlu0.b32.cont [6/16] 0.0, 128
    %954 = vxpose.xlu0.b32.cont [7/16] 0.0, 128
    %955 = vxpose.xlu0.b32.cont [8/16] 0.0, 128
    %956 = vxpose.xlu0.b32.cont [9/16] 0.0, 128
    %957 = vxpose.xlu0.b32.cont [10/16] 0.0, 128
    %958 = vxpose.xlu0.b32.cont [11/16] 0.0, 128
    %959 = vxpose.xlu0.b32.cont [12/16] 0.0, 128
    %960 = vxpose.xlu0.b32.cont [13/16] 0.0, 128
    %961 = vxpose.xlu0.b32.cont [14/16] 0.0, 128
    %962 = vxpose.xlu0.b32.cont [15/16] 0.0, 128
    %963 = vxpose.xlu0.b32.end [16/16] 0.0, 128
    %v964 = vpop.trf.xlu0
    %v965 = vpop.trf.xlu0
    %v966 = vpop.trf.xlu0
    %v967 = vpop.trf.xlu0
    %v968 = vpop.trf.xlu0
    %v969 = vpop.trf.xlu0
    %v970 = vpop.trf.xlu0
    %v971 = vpop.trf.xlu0
    %v972 = vpop.trf.xlu0
    %v973 = vpop.trf.xlu0
    %v974 = vpop.trf.xlu0
    %v975 = vpop.trf.xlu0
    %v976 = vpop.trf.xlu0
    %v977 = vpop.trf.xlu0
    %v978 = vpop.trf.xlu0
    %v979 = vpop.trf.xlu0
    %s980 = scalar_lea.vmem [#allocation8], 4
    %981 = vst.msk [vmem:[%s980] sm:$0xf] %vm329, %v964
    %v983 = vsel %vm189, %v842, 0
    %985 = vmatprep.subr.bf16.mxu0 0
    %986 = vmatpush1.bf16.msra.mxu0 %v842
    %987 = vmatprep.subr.bf16.mxu0 0
    %988 = vmatpush1.bf16.msra.mxu0 0
    %989 = vmatprep.subr.bf16.mxu0 0
    %990 = vmatpush1.bf16.msra.mxu0 0
    %991 = vmatprep.subr.bf16.mxu0 0
    %992 = vmatpush1.bf16.msra.mxu0 0
    %993 = vmatprep.subr.bf16.mxu0 0
    %994 = vmatpush1.bf16.msra.mxu0 0
    %995 = vmatprep.subr.bf16.mxu0 0
    %996 = vmatpush1.bf16.msra.mxu0 0
    %997 = vmatprep.subr.bf16.mxu0 0
    %998 = vmatpush1.bf16.msra.mxu0 0
    %999 = vmatprep.subr.bf16.mxu0 0
    %1000 = vmatpush1.bf16.msra.mxu0 0
    %1001 = vmatprep.subr.bf16.mxu0 0
    %1002 = vmatpush1.bf16.msra.mxu0 0
    %1003 = vmatprep.subr.bf16.mxu0 0
    %1004 = vmatpush1.bf16.msra.mxu0 0
    %1005 = vmatprep.subr.bf16.mxu0 0
    %1006 = vmatpush1.bf16.msra.mxu0 0
    %1007 = vmatprep.subr.bf16.mxu0 0
    %1008 = vmatpush1.bf16.msra.mxu0 0
    %1009 = vmatprep.subr.bf16.mxu0 0
    %1010 = vmatpush1.bf16.msra.mxu0 0
    %1011 = vmatprep.subr.bf16.mxu0 0
    %1012 = vmatpush1.bf16.msra.mxu0 0
    %1013 = vmatprep.subr.bf16.mxu0 0
    %1014 = vmatpush1.bf16.msra.mxu0 0
    %1015 = vmatprep.subr.bf16.mxu0 0
    %1016 = vmatpush1.bf16.msra.mxu0 0
    %1017 = vmatprep.mubr.bf16.mxu0 0
    %1018 = vmatmul.mubr.bf16.gmra.mrb[0].mxu0 %v983
    %v1019 = vpop.f32.mrb[0].mxu0
    %v1020 = vadd.f32 0.0, %v1019
    %v1021 = vpop.f32.mrb[0].mxu0
    %v1022 = vpop.f32.mrb[0].mxu0
    %v1023 = vadd.f32 0.0, %v1022
    %v1024 = vpop.f32.mrb[0].mxu0
    %1025 = vdwg.mxu0
    %v1026 = vmul.f32 %v1020, %v834
    %v1027 = vmul.f32 %v1023, %v835
    %v1028 = vsel %vm189, %v1026, -inf
    %1029 = vmax.xlane.f32.xlu0 %v1028
    %v1030 = vpop.xlane.xlu0 %1029
    %v1031 = vsel %vm189, %v1027, -inf
    %1032 = vmax.xlane.f32.xlu0 %v1031
    %v1033 = vpop.xlane.xlu0 %1032
    %v1034 = vsub.f32 %v1026, %v1030
    %v1035 = vsub.f32 %v1027, %v1033
    %v1036 = vmul.f32 %v1034, 1.442695
    %v1037 = vpow.pop %v1036
    %v1038 = vmul.f32 %v1035, 1.442695
    %v1039 = vpow.pop %v1038
    %v1040 = vsel %vm189, %v1037, 0.0
    %1041 = vadd.xlane.f32.xlu0 %v1040
    %v1042 = vpop.xlane.xlu0 %1041
    %v1043 = vsel %vm189, %v1039, 0.0
    %1044 = vadd.xlane.f32.xlu0 %v1043
    %v1045 = vpop.xlane.xlu0 %1044
    %v1046 = vrcp.pop %v1042
    %v1047 = vrcp.pop %v1045
    %v1048 = vmul.f32 %v1037, %v1046
    %v1049 = vmul.f32 %v1039, %v1047
    %1052 = vrot.lane.b32.xlu0 %v825, 124
    %v1053 = vpop.permute.xlu0 %1052
    %1054 = vrot.lane.b32.xlu0 %v830, 124
    %v1055 = vpop.permute.xlu0 %1054
    %v1059 = vsel %vm189, %v1048, 0
    %v1062 = vsel %vm189, %v1049, 0
    %1064 = vmatprep.subr.mxu0 0.0
    %1065 = vmatpush1.msra.mxu0 %v1053
    %1066 = vmatprep.subr.mxu0 0.0
    %1067 = vmatpush1.msra.mxu0 %v1055
    %1068 = vmatprep.subr.mxu0 0.0
    %1069 = vmatpush1.msra.mxu0 0.0
    %1070 = vmatprep.subr.mxu0 0.0
    %1071 = vmatpush1.msra.mxu0 0.0
    %1072 = vmatprep.subr.mxu0 0.0
    %1073 = vmatpush1.msra.mxu0 0.0
    %1074 = vmatprep.subr.mxu0 0.0
    %1075 = vmatpush1.msra.mxu0 0.0
    %1076 = vmatprep.subr.mxu0 0.0
    %1077 = vmatpush1.msra.mxu0 0.0
    %1078 = vmatprep.subr.mxu0 0.0
    %1079 = vmatpush1.msra.mxu0 0.0
    %1080 = vmatprep.subr.mxu0 0.0
    %1081 = vmatpush1.msra.mxu0 0.0
    %1082 = vmatprep.subr.mxu0 0.0
    %1083 = vmatpush1.msra.mxu0 0.0
    %1084 = vmatprep.subr.mxu0 0.0
    %1085 = vmatpush1.msra.mxu0 0.0
    %1086 = vmatprep.subr.mxu0 0.0
    %1087 = vmatpush1.msra.mxu0 0.0
    %1088 = vmatprep.subr.mxu0 0.0
    %1089 = vmatpush1.msra.mxu0 0.0
    %1090 = vmatprep.subr.mxu0 0.0
    %1091 = vmatpush1.msra.mxu0 0.0
    %1092 = vmatprep.subr.mxu0 0.0
    %1093 = vmatpush1.msra.mxu0 0.0
    %1094 = vmatprep.subr.mxu0 0.0
    %1095 = vmatpush1.msra.mxu0 0.0
    %1096 = vmatprep.subr.mxu0 0.0
    %1097 = vmatpush1.msra.mxu0 0.0
    %1098 = vmatprep.subr.mxu0 0.0
    %1099 = vmatpush1.msra.mxu0 0.0
    %1100 = vmatprep.subr.mxu0 0.0
    %1101 = vmatpush1.msra.mxu0 0.0
    %1102 = vmatprep.subr.mxu0 0.0
    %1103 = vmatpush1.msra.mxu0 0.0
    %1104 = vmatprep.subr.mxu0 0.0
    %1105 = vmatpush1.msra.mxu0 0.0
    %1106 = vmatprep.subr.mxu0 0.0
    %1107 = vmatpush1.msra.mxu0 0.0
    %1108 = vmatprep.subr.mxu0 0.0
    %1109 = vmatpush1.msra.mxu0 0.0
    %1110 = vmatprep.subr.mxu0 0.0
    %1111 = vmatpush1.msra.mxu0 0.0
    %1112 = vmatprep.subr.mxu0 0.0
    %1113 = vmatpush1.msra.mxu0 0.0
    %1114 = vmatprep.subr.mxu0 0.0
    %1115 = vmatpush1.msra.mxu0 0.0
    %1116 = vmatprep.subr.mxu0 0.0
    %1117 = vmatpush1.msra.mxu0 0.0
    %1118 = vmatprep.subr.mxu0 0.0
    %1119 = vmatpush1.msra.mxu0 0.0
    %1120 = vmatprep.subr.mxu0 0.0
    %1121 = vmatpush1.msra.mxu0 0.0
    %1122 = vmatprep.subr.mxu0 0.0
    %1123 = vmatpush1.msra.mxu0 0.0
    %1124 = vmatprep.subr.mxu0 0.0
    %1125 = vmatpush1.msra.mxu0 0.0
    %1126 = vmatprep.subr.mxu0 0.0
    %1127 = vmatpush1.msra.mxu0 0.0
    %1128 = vmatprep.mubr.f32.mxu0 0.0
    %1129 = vmatmul.mubr.f32.gmra.mrb[0].mxu0 %v1059
    %v1130 = vpop.f32.mrb[0].mxu0
    %v1131 = vadd.f32 %v402, %v1130
    %v1132 = vpop.f32.mrb[0].mxu0
    %1133 = vmatprep.mubr.f32.mxu0 0.0
    %1134 = vmatmul.mubr.f32.gmra.mrb[0].mxu0 %v1062
    %v1135 = vpop.f32.mrb[0].mxu0
    %v1136 = vadd.f32 %v402, %v1135
    %v1137 = vpop.f32.mrb[0].mxu0
    %1138 = vdwg.mxu0
    %1139 = vxpose.xlu0.b32.start [1/16] %v1131, 128
    %1140 = vxpose.xlu0.b32.cont [2/16] %v1136, 128
    %1141 = vxpose.xlu0.b32.cont [3/16] 0.0, 128
    %1142 = vxpose.xlu0.b32.cont [4/16] 0.0, 128
    %1143 = vxpose.xlu0.b32.cont [5/16] 0.0, 128
    %1144 = vxpose.xlu0.b32.cont [6/16] 0.0, 128
    %1145 = vxpose.xlu0.b32.cont [7/16] 0.0, 128
    %1146 = vxpose.xlu0.b32.cont [8/16] 0.0, 128
    %1147 = vxpose.xlu0.b32.cont [9/16] 0.0, 128
    %1148 = vxpose.xlu0.b32.cont [10/16] 0.0, 128
    %1149 = vxpose.xlu0.b32.cont [11/16] 0.0, 128
    %1150 = vxpose.xlu0.b32.cont [12/16] 0.0, 128
    %1151 = vxpose.xlu0.b32.cont [13/16] 0.0, 128
    %1152 = vxpose.xlu0.b32.cont [14/16] 0.0, 128
    %1153 = vxpose.xlu0.b32.cont [15/16] 0.0, 128
    %1154 = vxpose.xlu0.b32.end [16/16] 0.0, 128
    %v1155 = vpop.trf.xlu0
    %v1156 = vpop.trf.xlu0
    %v1157 = vpop.trf.xlu0
    %v1158 = vpop.trf.xlu0
    %v1159 = vpop.trf.xlu0
    %v1160 = vpop.trf.xlu0
    %v1161 = vpop.trf.xlu0
    %v1162 = vpop.trf.xlu0
    %v1163 = vpop.trf.xlu0
    %v1164 = vpop.trf.xlu0
    %v1165 = vpop.trf.xlu0
    %v1166 = vpop.trf.xlu0
    %v1167 = vpop.trf.xlu0
    %v1168 = vpop.trf.xlu0
    %v1169 = vpop.trf.xlu0
    %v1170 = vpop.trf.xlu0
    %s1171 = scalar_lea.vmem [#allocation9], 4
    %1172 = vst.msk [vmem:[%s1171] sm:$0xf] %vm329, %v1155
    %v1173 = vpack.c.bf16 %v1023, %v1020
    %v1175 = vsel %vm189, %v1173, 0
    %1177 = vmatprep.subr.bf16.mxu0 0
    %1178 = vmatpush1.bf16.msra.mxu0 %v842
    %1179 = vmatprep.subr.bf16.mxu0 0
    %1180 = vmatpush1.bf16.msra.mxu0 0
    %1181 = vmatprep.subr.bf16.mxu0 0
    %1182 = vmatpush1.bf16.msra.mxu0 0
    %1183 = vmatprep.subr.bf16.mxu0 0
    %1184 = vmatpush1.bf16.msra.mxu0 0
    %1185 = vmatprep.subr.bf16.mxu0 0
    %1186 = vmatpush1.bf16.msra.mxu0 0
    %1187 = vmatprep.subr.bf16.mxu0 0
    %1188 = vmatpush1.bf16.msra.mxu0 0
    %1189 = vmatprep.subr.bf16.mxu0 0
    %1190 = vmatpush1.bf16.msra.mxu0 0
    %1191 = vmatprep.subr.bf16.mxu0 0
    %1192 = vmatpush1.bf16.msra.mxu0 0
    %1193 = vmatprep.subr.bf16.mxu0 0
    %1194 = vmatpush1.bf16.msra.mxu0 0
    %1195 = vmatprep.subr.bf16.mxu0 0
    %1196 = vmatpush1.bf16.msra.mxu0 0
    %1197 = vmatprep.subr.bf16.mxu0 0
    %1198 = vmatpush1.bf16.msra.mxu0 0
    %1199 = vmatprep.subr.bf16.mxu0 0
    %1200 = vmatpush1.bf16.msra.mxu0 0
    %1201 = vmatprep.subr.bf16.mxu0 0
    %1202 = vmatpush1.bf16.msra.mxu0 0
    %1203 = vmatprep.subr.bf16.mxu0 0
    %1204 = vmatpush1.bf16.msra.mxu0 0
    %1205 = vmatprep.subr.bf16.mxu0 0
    %1206 = vmatpush1.bf16.msra.mxu0 0
    %1207 = vmatprep.subr.bf16.mxu0 0
    %1208 = vmatpush1.bf16.msra.mxu0 0
    %1209 = vmatprep.mubr.bf16.mxu0 0
    %1210 = vmatmul.mubr.bf16.gmra.mrb[0].mxu0 %v1175
    %v1211 = vpop.f32.mrb[0].mxu0
    %v1212 = vadd.f32 0.0, %v1211
    %v1213 = vpop.f32.mrb[0].mxu0
    %v1214 = vpop.f32.mrb[0].mxu0
    %v1215 = vadd.f32 0.0, %v1214
    %v1216 = vpop.f32.mrb[0].mxu0
    %1217 = vdwg.mxu0
    %v1218 = vmul.f32 %v1212, %v834
    %v1219 = vmul.f32 %v1215, %v835
    %v1220 = vsel %vm189, %v1218, -inf
    %1221 = vmax.xlane.f32.xlu0 %v1220
    %v1222 = vpop.xlane.xlu0 %1221
    %v1223 = vsel %vm189, %v1219, -inf
    %1224 = vmax.xlane.f32.xlu0 %v1223
    %v1225 = vpop.xlane.xlu0 %1224
    %v1226 = vsub.f32 %v1218, %v1222
    %v1227 = vsub.f32 %v1219, %v1225
    %v1228 = vmul.f32 %v1226, 1.442695
    %v1229 = vpow.pop %v1228
    %v1230 = vmul.f32 %v1227, 1.442695
    %v1231 = vpow.pop %v1230
    %v1232 = vsel %vm189, %v1229, 0.0
    %1233 = vadd.xlane.f32.xlu0 %v1232
    %v1234 = vpop.xlane.xlu0 %1233
    %v1235 = vsel %vm189, %v1231, 0.0
    %1236 = vadd.xlane.f32.xlu0 %v1235
    %v1237 = vpop.xlane.xlu0 %1236
    %v1238 = vrcp.pop %v1234
    %v1239 = vrcp.pop %v1237
    %v1240 = vmul.f32 %v1229, %v1238
    %v1241 = vmul.f32 %v1231, %v1239
    %1242 = vrot.lane.b32.xlu0 %v825, 120
    %v1243 = vpop.permute.xlu0 %1242
    %1244 = vrot.lane.b32.xlu0 %v830, 120
    %v1245 = vpop.permute.xlu0 %1244
    %v1249 = vsel %vm189, %v1240, 0
    %v1252 = vsel %vm189, %v1241, 0
    %1254 = vmatprep.subr.mxu0 0.0
    %1255 = vmatpush1.msra.mxu0 %v1243
    %1256 = vmatprep.subr.mxu0 0.0
    %1257 = vmatpush1.msra.mxu0 %v1245
    %1258 = vmatprep.subr.mxu0 0.0
    %1259 = vmatpush1.msra.mxu0 0.0
    %1260 = vmatprep.subr.mxu0 0.0
    %1261 = vmatpush1.msra.mxu0 0.0
    %1262 = vmatprep.subr.mxu0 0.0
    %1263 = vmatpush1.msra.mxu0 0.0
    %1264 = vmatprep.subr.mxu0 0.0
    %1265 = vmatpush1.msra.mxu0 0.0
    %1266 = vmatprep.subr.mxu0 0.0
    %1267 = vmatpush1.msra.mxu0 0.0
    %1268 = vmatprep.subr.mxu0 0.0
    %1269 = vmatpush1.msra.mxu0 0.0
    %1270 = vmatprep.subr.mxu0 0.0
    %1271 = vmatpush1.msra.mxu0 0.0
    %1272 = vmatprep.subr.mxu0 0.0
    %1273 = vmatpush1.msra.mxu0 0.0
    %1274 = vmatprep.subr.mxu0 0.0
    %1275 = vmatpush1.msra.mxu0 0.0
    %1276 = vmatprep.subr.mxu0 0.0
    %1277 = vmatpush1.msra.mxu0 0.0
    %1278 = vmatprep.subr.mxu0 0.0
    %1279 = vmatpush1.msra.mxu0 0.0
    %1280 = vmatprep.subr.mxu0 0.0
    %1281 = vmatpush1.msra.mxu0 0.0
    %1282 = vmatprep.subr.mxu0 0.0
    %1283 = vmatpush1.msra.mxu0 0.0
    %1284 = vmatprep.subr.mxu0 0.0
    %1285 = vmatpush1.msra.mxu0 0.0
    %1286 = vmatprep.subr.mxu0 0.0
    %1287 = vmatpush1.msra.mxu0 0.0
    %1288 = vmatprep.subr.mxu0 0.0
    %1289 = vmatpush1.msra.mxu0 0.0
    %1290 = vmatprep.subr.mxu0 0.0
    %1291 = vmatpush1.msra.mxu0 0.0
    %1292 = vmatprep.subr.mxu0 0.0
    %1293 = vmatpush1.msra.mxu0 0.0
    %1294 = vmatprep.subr.mxu0 0.0
    %1295 = vmatpush1.msra.mxu0 0.0
    %1296 = vmatprep.subr.mxu0 0.0
    %1297 = vmatpush1.msra.mxu0 0.0
    %1298 = vmatprep.subr.mxu0 0.0
    %1299 = vmatpush1.msra.mxu0 0.0
    %1300 = vmatprep.subr.mxu0 0.0
    %1301 = vmatpush1.msra.mxu0 0.0
    %1302 = vmatprep.subr.mxu0 0.0
    %1303 = vmatpush1.msra.mxu0 0.0
    %1304 = vmatprep.subr.mxu0 0.0
    %1305 = vmatpush1.msra.mxu0 0.0
    %1306 = vmatprep.subr.mxu0 0.0
    %1307 = vmatpush1.msra.mxu0 0.0
    %1308 = vmatprep.subr.mxu0 0.0
    %1309 = vmatpush1.msra.mxu0 0.0
    %1310 = vmatprep.subr.mxu0 0.0
    %1311 = vmatpush1.msra.mxu0 0.0
    %1312 = vmatprep.subr.mxu0 0.0
    %1313 = vmatpush1.msra.mxu0 0.0
    %1314 = vmatprep.subr.mxu0 0.0
    %1315 = vmatpush1.msra.mxu0 0.0
    %1316 = vmatprep.subr.mxu0 0.0
    %1317 = vmatpush1.msra.mxu0 0.0
    %1318 = vmatprep.mubr.f32.mxu0 0.0
    %1319 = vmatmul.mubr.f32.gmra.mrb[0].mxu0 %v1249
    %v1320 = vpop.f32.mrb[0].mxu0
    %v1321 = vadd.f32 %v597, %v1320
    %v1322 = vpop.f32.mrb[0].mxu0
    %1323 = vmatprep.mubr.f32.mxu0 0.0
    %1324 = vmatmul.mubr.f32.gmra.mrb[0].mxu0 %v1252
    %v1325 = vpop.f32.mrb[0].mxu0
    %v1326 = vadd.f32 %v597, %v1325
    %v1327 = vpop.f32.mrb[0].mxu0
    %1328 = vdwg.mxu0
    %1329 = vxpose.xlu0.b32.start [1/16] %v1321, 128
    %1330 = vxpose.xlu0.b32.cont [2/16] %v1326, 128
    %1331 = vxpose.xlu0.b32.cont [3/16] 0.0, 128
    %1332 = vxpose.xlu0.b32.cont [4/16] 0.0, 128
    %1333 = vxpose.xlu0.b32.cont [5/16] 0.0, 128
    %1334 = vxpose.xlu0.b32.cont [6/16] 0.0, 128
    %1335 = vxpose.xlu0.b32.cont [7/16] 0.0, 128
    %1336 = vxpose.xlu0.b32.cont [8/16] 0.0, 128
    %1337 = vxpose.xlu0.b32.cont [9/16] 0.0, 128
    %1338 = vxpose.xlu0.b32.cont [10/16] 0.0, 128
    %1339 = vxpose.xlu0.b32.cont [11/16] 0.0, 128
    %1340 = vxpose.xlu0.b32.cont [12/16] 0.0, 128
    %1341 = vxpose.xlu0.b32.cont [13/16] 0.0, 128
    %1342 = vxpose.xlu0.b32.cont [14/16] 0.0, 128
    %1343 = vxpose.xlu0.b32.cont [15/16] 0.0, 128
    %1344 = vxpose.xlu0.b32.end [16/16] 0.0, 128
    %v1345 = vpop.trf.xlu0
    %v1346 = vpop.trf.xlu0
    %v1347 = vpop.trf.xlu0
    %v1348 = vpop.trf.xlu0
    %v1349 = vpop.trf.xlu0
    %v1350 = vpop.trf.xlu0
    %v1351 = vpop.trf.xlu0
    %v1352 = vpop.trf.xlu0
    %v1353 = vpop.trf.xlu0
    %v1354 = vpop.trf.xlu0
    %v1355 = vpop.trf.xlu0
    %v1356 = vpop.trf.xlu0
    %v1357 = vpop.trf.xlu0
    %v1358 = vpop.trf.xlu0
    %v1359 = vpop.trf.xlu0
    %v1360 = vpop.trf.xlu0
    %s1361 = scalar_lea.vmem [#allocation11], 4
    %1362 = vst.msk [vmem:[%s1361] sm:$0xf] %vm329, %v1345
    // Predicated region
    $region30: #{tpu_custom_call.1} parent=1 // pred_check
      _
    $region31: #{tpu_custom_call.1} parent=1 // pred_check_branch
      %1364 = sbr.rel (0) target = $region33
    $region32: #{tpu_custom_call.1} parent=1 // pred_region
      %s1366 = ssub.s32 128, 128
      %1367 = vsyncadd [#allocation5], %s1366
      %s1368 = sshll.u32 [#allocation8], 4
      %s1369 = int_to_ptr.vmem [resolvable:$true] %s1368
      %1374 = dma.vmem_to_hbm [thread:$0]  %s1369, 128, %s5, [#allocation5], 64, 64, 4
    $region33: #{tpu_custom_call.1} parent=1 // pred_fallthru
      _
    // Predicated region
    $region34: #{tpu_custom_call.1} parent=1 // pred_check
      _
    $region35: #{tpu_custom_call.1} parent=1 // pred_check_branch
      %1376 = sbr.rel (0) target = $region37
    $region36: #{tpu_custom_call.1} parent=1 // pred_region
      %s1378 = ssub.s32 128, 128
      %1379 = vsyncadd [#allocation10], %s1378
      %s1380 = sshll.u32 [#allocation9], 4
      %s1381 = int_to_ptr.vmem [resolvable:$true] %s1380
      %1386 = dma.vmem_to_hbm [thread:$0]  %s1381, 128, %s6, [#allocation10], 64, 64, 4
    $region37: #{tpu_custom_call.1} parent=1 // pred_fallthru
      _
    // Predicated region
    $region38: #{tpu_custom_call.1} parent=1 // pred_check
      _
    $region39: #{tpu_custom_call.1} parent=1 // pred_check_branch
      %1388 = sbr.rel (0) target = $region41
    $region40: #{tpu_custom_call.1} parent=1 // pred_region
      %s1390 = ssub.s32 128, 128
      %1391 = vsyncadd [#allocation10], %s1390
      %s1392 = sshll.u32 [#allocation11], 4
      %s1393 = int_to_ptr.vmem [resolvable:$true] %s1392
      %1398 = dma.vmem_to_hbm [thread:$0]  %s1393, 128, %s7, [#allocation10], 64, 64, 4
    $region41: #{tpu_custom_call.1} parent=1 // pred_fallthru
      _
    // Predicated region
    $region42: #{tpu_custom_call.1} parent=1 // pred_check
      _
    $region43: #{tpu_custom_call.1} parent=1 // pred_check_branch
      %1400 = sbr.rel (0) target = $region45
    $region44: #{tpu_custom_call.1} parent=1 // pred_region
      %1401 = dma.done [#allocation5], 128
    $region45: #{tpu_custom_call.1} parent=1 // pred_fallthru
      _
    // Predicated region
    $region46: #{tpu_custom_call.1} parent=1 // pred_check
      _
    $region47: #{tpu_custom_call.1} parent=1 // pred_check_branch
      %1403 = sbr.rel (0) target = $region49
    $region48: #{tpu_custom_call.1} parent=1 // pred_region
      %1404 = dma.done [#allocation10], 128
    $region49: #{tpu_custom_call.1} parent=1 // pred_fallthru
      _
    // Predicated region
    $region50: #{tpu_custom_call.1} parent=1 // pred_check
      _
    $region51: #{tpu_custom_call.1} parent=1 // pred_check_branch
      %1406 = sbr.rel (0) target = $region53
    $region52: #{tpu_custom_call.1} parent=1 // pred_region
      %1407 = dma.done [#allocation10], 128
    $region53: #{tpu_custom_call.1} parent=1 // pred_fallthru
      _
    %1408 = vsyncpa [#allocation4], 1
    %1409 = vsyncpa [#allocation7], 1
    %1410 = vsyncpa [#allocation5], 1
    %1411 = vsyncpa [#allocation10], 1

</llo_original>
